<compile_context>
chip_gen: v7x
topology: tpu7x:2x2x1
jax: 0.10.0
libtpu: 0.0.40
codegen_flags: <defaults>
</compile_context>

<pallas_src>
import functools

import jax
import jax.numpy as jnp
from jax import lax
from jax.experimental import pallas as pl
from jax.experimental.pallas import tpu as pltpu


# ------------------------------ fused forward kernel ------------------------------

def _lstm_lm_kernel(ids_ref, emb_ref, wih_ref, whh_ref, b_ref, h0_ref, c0_ref,
                    fcw_ref, fcb_ref,
                    logits_ref, hN_ref, cN_ref,
                    y_sc, pg_sc):
    """Fused LSTM-LM forward.

    ids_ref:  (T*Bp, 1)   int32 token ids, time-major, batch padded to Bp (mult of 8)
    emb_ref:  (Ep, H)     bf16 embedding table, rows padded to Ep (mult of 128)
    wih_ref:  (L, H, 4H)  bf16 W_ih^T per layer;  whh_ref: (L, H, 4H)  bf16 W_hh^T
    b_ref:    (L, 1, 4H)  f32  b_ih + b_hh per layer
    h0_ref / c0_ref: (L, Bp, H) f32
    fcw_ref:  (H, Vp)     bf16 fc weight^T, vocab padded to Vp (mult of 128)
    fcb_ref:  (1, Vp)     f32
    logits_ref: (T*Bp, Vp);  hN_ref / cN_ref: (L, Bp, H)
    y_sc:  (T*Bp, H)  f32 VMEM — current layer's output sequence
    pg_sc: (T*Bp, 4H) f32 VMEM — hoisted input projection (x @ W_ih^T + bias)
    """
    n_layer, B_pad, H = h0_ref.shape
    TB = ids_ref.shape[0]
    T = TB // B_pad
    G = 4 * H
    E_pad = emb_ref.shape[0]

    # ---- hoisted constants (JAX does not CSE broadcast/iota inside loops) ----
    # Gate order (i, f, g, o).  sigmoid(x) = 0.5*tanh(0.5*x) + 0.5  =>  one tanh pass:
    #   alpha = 1.0 on 'g' lanes, 0.5 on sigmoid lanes (used both as pre-scale and slope)
    #   beta  = 0.0 on 'g' lanes, 0.5 on sigmoid lanes
    lane = lax.broadcasted_iota(jnp.int32, (B_pad, G), 1)
    g_lane = (lane >= 2 * H) & (lane < 3 * H)
    alpha = jnp.where(g_lane, 1.0, 0.5).astype(jnp.float32)
    beta = jnp.where(g_lane, 0.0, 0.5).astype(jnp.float32)

    # ---- in-kernel embedding gather via exact one-hot MXU matmul ----
    vocab_iota = lax.broadcasted_iota(jnp.int32, (TB, E_pad), 1)
    onehot = (vocab_iota == ids_ref[...]).astype(jnp.bfloat16)       # exact 0/1
    x = jnp.dot(onehot, emb_ref[...],
                preferred_element_type=jnp.float32)                  # (TB, H) f32

    for l in range(n_layer):  # static, small
        # Hoisted input projection + bias for the WHOLE sequence: one big bf16 MXU matmul
        # with M = T*Bp instead of T tiny matmuls inside the serial loop.
        inp = x if l == 0 else y_sc[...]
        pg_sc[...] = (jnp.dot(inp.astype(jnp.bfloat16), wih_ref[l],
                              preferred_element_type=jnp.float32) + b_ref[l])

        whh = whh_ref[l]                           # (H, 4H) bf16, loaded once per layer
        h0l = h0_ref[l]                            # (Bp, H) f32
        c0l = c0_ref[l]

        def step(t, carry):
            h, c = carry                                          # f32 carries
            off = pl.multiple_of(t * B_pad, B_pad)                # 8-aligned sublanes
            gates = (pg_sc[pl.ds(off, B_pad), :]
                     + jnp.dot(h.astype(jnp.bfloat16), whh,
                               preferred_element_type=jnp.float32))
            # Single full-vreg tanh for all four gates (sigmoid via tanh identity).
            th = jnp.tanh(gates * alpha)
            act = th * alpha + beta                               # f32 elementwise
            i = act[:, 0:H]
            f = act[:, H:2 * H]
            g = act[:, 2 * H:3 * H]
            o = act[:, 3 * H:4 * H]
            c_new = f * c + i * g
            h_new = o * jnp.tanh(c_new)
            y_sc[pl.ds(off, B_pad), :] = h_new
            return h_new, c_new

        unroll = True if T <= 16 else 8            # full unroll only while T is small
        hT, cT = lax.fori_loop(0, T, step, (h0l, c0l), unroll=unroll)
        hN_ref[l] = hT
        cN_ref[l] = cT

    # Final Linear over the full sequence; Vp multiple of 128 -> lane-dense store.
    logits_ref[...] = (jnp.dot(y_sc[...].astype(jnp.bfloat16), fcw_ref[...],
                               preferred_element_type=jnp.float32)
                       + fcb_ref[...]).astype(logits_ref.dtype)


def _full_spec(shape):
    return pl.BlockSpec(shape, lambda: (0,) * len(shape))


def lstm_lm_pallas(ids2d, emb, wih, whh, bias, h0, c0, fcw, fcb):
    TB = ids2d.shape[0]
    H = emb.shape[1]
    n_layer, B_pad, _ = h0.shape
    V_pad = fcw.shape[1]
    return pl.pallas_call(
        _lstm_lm_kernel,
        out_shape=(
            jax.ShapeDtypeStruct((TB, V_pad), jnp.float32),
            jax.ShapeDtypeStruct((n_layer, B_pad, H), jnp.float32),
            jax.ShapeDtypeStruct((n_layer, B_pad, H), jnp.float32),
        ),
        in_specs=[_full_spec(ids2d.shape), _full_spec(emb.shape),
                  _full_spec(wih.shape), _full_spec(whh.shape),
                  _full_spec(bias.shape), _full_spec(h0.shape),
                  _full_spec(c0.shape), _full_spec(fcw.shape),
                  _full_spec(fcb.shape)],
        out_specs=(
            _full_spec((TB, V_pad)),
            _full_spec((n_layer, B_pad, H)),
            _full_spec((n_layer, B_pad, H)),
        ),
        scratch_shapes=[
            pltpu.VMEM((TB, H), jnp.float32),       # y: layer output sequence
            pltpu.VMEM((TB, 4 * H), jnp.float32),   # hoisted input projection
        ],
        # NOTE: no vmem_limit_bytes — footprint is < 1 MiB, default scoped VMEM is ample.
    )(ids2d, emb, wih, whh, bias, h0, c0, fcw, fcb)


# --------------------------------- model wrapper ----------------------------------

def init_params(key, h_dim=32, n_layer=2, n_token=28):
    ks = jax.random.split(key, 3 + 4 * n_layer)
    k = 1.0 / jnp.sqrt(jnp.float32(h_dim))
    params = {
        "embedding": jax.random.normal(ks[0], (n_token, h_dim), jnp.float32),
        "fc_w_t": jax.random.uniform(ks[1], (h_dim, n_token), jnp.float32, -k, k),
        "fc_b": jax.random.uniform(ks[2], (1, n_token), jnp.float32, -k, k),
    }
    for l in range(n_layer):
        in_dim = h_dim  # all layers h_dim -> h_dim (embedding dim == h_dim)
        params[f"w_ih_t_{l}"] = jax.random.uniform(
            ks[3 + 4 * l], (in_dim, 4 * h_dim), jnp.float32, -k, k)
        params[f"w_hh_t_{l}"] = jax.random.uniform(
            ks[4 + 4 * l], (h_dim, 4 * h_dim), jnp.float32, -k, k)
        b_ih = jax.random.uniform(ks[5 + 4 * l], (4 * h_dim,), jnp.float32, -k, k)
        b_hh = jax.random.uniform(ks[6 + 4 * l], (4 * h_dim,), jnp.float32, -k, k)
        params[f"bias_{l}"] = (b_ih + b_hh).reshape(1, 4 * h_dim)
    return params


@functools.partial(jax.jit, static_argnames=("n_layer",))
def lstm_lm_forward(params, input_ids, hidden, n_layer):
    """input_ids: (B, T) int32; hidden = (h0, c0), each (n_layer, B, H).
    Returns (logits (B, T, n_token), (h_n, c_n))."""
    h0, c0 = hidden
    B, T = input_ids.shape
    H = params["embedding"].shape[1]
    n_emb = params["embedding"].shape[0]
    V = params["fc_w_t"].shape[1]
    B_pad = ((B + 7) // 8) * 8            # sublane-friendly batch
    V_pad = ((V + 127) // 128) * 128      # lane-dense logits
    E_pad = ((n_emb + 127) // 128) * 128  # lane-dense one-hot gather

    # Token ids go straight into the kernel (gather happens in-kernel via one-hot matmul).
    ids_tm = jnp.transpose(input_ids, (1, 0)).astype(jnp.int32)        # (T, B)
    ids_tm = jnp.pad(ids_tm, ((0, 0), (0, B_pad - B)))                 # padded rows -> id 0
    ids2d = ids_tm.reshape(T * B_pad, 1)

    emb = jnp.pad(params["embedding"],
                  ((0, E_pad - n_emb), (0, 0))).astype(jnp.bfloat16)

    h0p = jnp.pad(h0.astype(jnp.float32), ((0, 0), (0, B_pad - B), (0, 0)))
    c0p = jnp.pad(c0.astype(jnp.float32), ((0, 0), (0, B_pad - B), (0, 0)))

    # bf16 MXU operands; f32 biases (added post-matmul in the f32 accumulator).
    wih = jnp.stack([params[f"w_ih_t_{l}"] for l in range(n_layer)]).astype(jnp.bfloat16)
    whh = jnp.stack([params[f"w_hh_t_{l}"] for l in range(n_layer)]).astype(jnp.bfloat16)
    bias = jnp.stack([params[f"bias_{l}"] for l in range(n_layer)])

    fcw = jnp.pad(params["fc_w_t"], ((0, 0), (0, V_pad - V))).astype(jnp.bfloat16)
    fcb = jnp.pad(params["fc_b"], ((0, 0), (0, V_pad - V)))

    logits2d, hN, cN = lstm_lm_pallas(ids2d, emb, wih, whh, bias, h0p, c0p, fcw, fcb)

    logits = logits2d.reshape(T, B_pad, V_pad)[:, :B, :V]
    logits = jnp.transpose(logits, (1, 0, 2))                          # (B, T, V)
    return logits, (hN[:, :B, :], cN[:, :B, :])


# ------------------------------- pure-JAX reference --------------------------------

def lstm_lm_reference(params, input_ids, hidden, n_layer):
    h0, c0 = hidden
    x = jnp.take(params["embedding"], input_ids, axis=0)   # (B, T, H)
    B, T, H = x.shape
    out = x
    hs, cs = [], []
    for l in range(n_layer):
        h = h0[l]
        c = c0[l]
        ys = []
        for t in range(T):
            gates = (out[:, t, :] @ params[f"w_ih_t_{l}"]
                     + h @ params[f"w_hh_t_{l}"] + params[f"bias_{l}"])
            i = jax.nn.sigmoid(gates[:, 0:H])
            f = jax.nn.sigmoid(gates[:, H:2 * H])
            g = jnp.tanh(gates[:, 2 * H:3 * H])
            o = jax.nn.sigmoid(gates[:, 3 * H:4 * H])
            c = f * c + i * g
            h = o * jnp.tanh(c)
            ys.append(h)
        out = jnp.stack(ys, axis=1)
        hs.append(h)
        cs.append(c)
    logits = out @ params["fc_w_t"] + params["fc_b"]
    return logits, (jnp.stack(hs), jnp.stack(cs))


# ---------------------------------------- main --------------------------------------

if __name__ == "__main__":
    B, T = 2, 8
    H_DIM, N_LAYER, N_TOKEN = 32, 2, 28

    key = jax.random.PRNGKey(0)
    kp, kid, kh, kc = jax.random.split(key, 4)

    params = init_params(kp, h_dim=H_DIM, n_layer=N_LAYER, n_token=N_TOKEN)
    input_ids = jax.random.randint(kid, (B, T), 0, N_TOKEN, dtype=jnp.int32)
    h0 = jax.random.normal(kh, (N_LAYER, B, H_DIM), jnp.float32) * 0.1
    c0 = jax.random.normal(kc, (N_LAYER, B, H_DIM), jnp.float32) * 0.1

    logits, (h_n, c_n) = lstm_lm_forward(params, input_ids, (h0, c0), N_LAYER)
    jax.block_until_ready((logits, h_n, c_n))

    logits_ref, (h_ref, c_ref) = lstm_lm_reference(params, input_ids, (h0, c0), N_LAYER)

    assert logits.shape == (B, T, N_TOKEN)
    assert h_n.shape == (N_LAYER, B, H_DIM) and c_n.shape == (N_LAYER, B, H_DIM)
    # Tolerance relaxed (per review) because MXU operands are bf16 vs. the f32 reference.
    assert jnp.allclose(logits, logits_ref, atol=5e-2, rtol=5e-2)
    assert jnp.allclose(h_n, h_ref, atol=5e-2, rtol=5e-2)
    assert jnp.allclose(c_n, c_ref, atol=5e-2, rtol=5e-2)

    print("KERNEL_OK")
</pallas_src>

<mosaic_0001>
module attributes {stable_mosaic.version = 11 : i64} {
  func.func @_lstm_lm_kernel(%arg0: memref<64x1xi32, #tpu.memory_space<vmem>>, %arg1: memref<128x32xbf16, #tpu.memory_space<vmem>>, %arg2: memref<2x32x128xbf16, #tpu.memory_space<vmem>>, %arg3: memref<2x32x128xbf16, #tpu.memory_space<vmem>>, %arg4: memref<2x1x128xf32, #tpu.memory_space<vmem>>, %arg5: memref<2x8x32xf32, #tpu.memory_space<vmem>>, %arg6: memref<2x8x32xf32, #tpu.memory_space<vmem>>, %arg7: memref<32x128xbf16, #tpu.memory_space<vmem>>, %arg8: memref<1x128xf32, #tpu.memory_space<vmem>>, %arg9: memref<64x128xf32, #tpu.memory_space<vmem>>, %arg10: memref<2x8x32xf32, #tpu.memory_space<vmem>>, %arg11: memref<2x8x32xf32, #tpu.memory_space<vmem>>, %arg12: memref<64x32xf32, #tpu.memory_space<vmem>>, %arg13: memref<64x128xf32, #tpu.memory_space<vmem>>) attributes {dimension_semantics = [], scalar_prefetch = 0 : i64, scratch_operands = 2 : i64, tpu.core_type = #tpu.core_type<tc>} {
    %0 = tpu.iota {dimensions = array<i32: 1>} : vector<8x128xi32>
    %c64_i32 = arith.constant 64 : i32
    %1 = vector.broadcast %c64_i32 : i32 to vector<8x128xi32>
    %2 = arith.cmpi sge, %0, %1 : vector<8x128xi32>
    %c96_i32 = arith.constant 96 : i32
    %3 = vector.broadcast %c96_i32 : i32 to vector<8x128xi32>
    %4 = arith.cmpi slt, %0, %3 : vector<8x128xi32>
    %5 = arith.andi %2, %4 : vector<8x128xi1>
    %cst = arith.constant 1.000000e+00 : f32
    %cst_0 = arith.constant 5.000000e-01 : f32
    %6 = vector.broadcast %cst : f32 to vector<8x128xf32>
    %7 = vector.broadcast %cst_0 : f32 to vector<8x128xf32>
    %8 = arith.select %5, %6, %7 : vector<8x128xi1>, vector<8x128xf32>
    %cst_1 = arith.constant 0.000000e+00 : f32
    %cst_2 = arith.constant 5.000000e-01 : f32
    %9 = vector.broadcast %cst_1 : f32 to vector<8x128xf32>
    %10 = vector.broadcast %cst_2 : f32 to vector<8x128xf32>
    %11 = arith.select %5, %9, %10 : vector<8x128xi1>, vector<8x128xf32>
    %12 = tpu.iota {dimensions = array<i32: 1>} : vector<64x128xi32>
    %c0 = arith.constant 0 : index
    %c0_3 = arith.constant 0 : index
    %13 = vector.load %arg0[%c0, %c0_3] : memref<64x1xi32, #tpu.memory_space<vmem>>, vector<64x1xi32>
    %14 = vector.broadcast %13 : vector<64x1xi32> to vector<64x128xi32>
    %15 = arith.cmpi eq, %12, %14 : vector<64x128xi32>
    %16 = arith.extui %15 : vector<64x128xi1> to vector<64x128xi32>
    %17 = arith.sitofp %16 : vector<64x128xi32> to vector<64x128xf32>
    %18 = arith.truncf %17 : vector<64x128xf32> to vector<64x128xbf16>
    %c0_4 = arith.constant 0 : index
    %c0_5 = arith.constant 0 : index
    %19 = vector.load %arg1[%c0_4, %c0_5] : memref<128x32xbf16, #tpu.memory_space<vmem>>, vector<128x32xbf16>
    %cst_6 = arith.constant dense<0.000000e+00> : vector<64x32xf32>
    %20 = tpu.matmul %18, %19, %cst_6 {dimension_numbers = #tpu.dot_dimension_numbers<[1], [0], [0], [1], [0, 0, 1, 1], [], []>} : vector<64x128xbf16>, vector<128x32xbf16>, vector<64x32xf32> -> vector<64x32xf32>
    %21 = arith.truncf %20 : vector<64x32xf32> to vector<64x32xbf16>
    %c0_7 = arith.constant 0 : index
    %c0_8 = arith.constant 0 : index
    %c0_9 = arith.constant 0 : index
    %22 = vector.load %arg2[%c0_7, %c0_8, %c0_9] : memref<2x32x128xbf16, #tpu.memory_space<vmem>>, vector<1x32x128xbf16>
    %23 = vector.shape_cast %22 : vector<1x32x128xbf16> to vector<32x128xbf16>
    %cst_10 = arith.constant dense<0.000000e+00> : vector<64x128xf32>
    %24 = tpu.matmul %21, %23, %cst_10 {dimension_numbers = #tpu.dot_dimension_numbers<[1], [0], [0], [1], [0, 0, 1, 1], [], []>} : vector<64x32xbf16>, vector<32x128xbf16>, vector<64x128xf32> -> vector<64x128xf32>
    %c0_11 = arith.constant 0 : index
    %c0_12 = arith.constant 0 : index
    %c0_13 = arith.constant 0 : index
    %25 = vector.load %arg4[%c0_11, %c0_12, %c0_13] : memref<2x1x128xf32, #tpu.memory_space<vmem>>, vector<1x1x128xf32>
    %26 = vector.shape_cast %25 : vector<1x1x128xf32> to vector<1x128xf32>
    %27 = vector.broadcast %26 : vector<1x128xf32> to vector<64x128xf32>
    %28 = arith.addf %24, %27 : vector<64x128xf32>
    %c0_14 = arith.constant 0 : index
    %c0_15 = arith.constant 0 : index
    %29 = vector.load %arg13[%c0_14, %c0_15] : memref<64x128xf32, #tpu.memory_space<vmem>>, vector<64x128xf32>
    tpu.vector_store %arg13[%c0_14, %c0_15], %28 {strides = array<i32>} : memref<64x128xf32, #tpu.memory_space<vmem>>, vector<64x128xf32>,
    %c0_16 = arith.constant 0 : index
    %c0_17 = arith.constant 0 : index
    %c0_18 = arith.constant 0 : index
    %30 = vector.load %arg3[%c0_16, %c0_17, %c0_18] : memref<2x32x128xbf16, #tpu.memory_space<vmem>>, vector<1x32x128xbf16>
    %31 = vector.shape_cast %30 : vector<1x32x128xbf16> to vector<32x128xbf16>
    %c0_19 = arith.constant 0 : index
    %c0_20 = arith.constant 0 : index
    %c0_21 = arith.constant 0 : index
    %32 = vector.load %arg5[%c0_19, %c0_20, %c0_21] : memref<2x8x32xf32, #tpu.memory_space<vmem>>, vector<1x8x32xf32>
    %33 = vector.shape_cast %32 : vector<1x8x32xf32> to vector<8x32xf32>
    %c0_22 = arith.constant 0 : index
    %c0_23 = arith.constant 0 : index
    %c0_24 = arith.constant 0 : index
    %34 = vector.load %arg6[%c0_22, %c0_23, %c0_24] : memref<2x8x32xf32, #tpu.memory_space<vmem>>, vector<1x8x32xf32>
    %35 = vector.shape_cast %34 : vector<1x8x32xf32> to vector<8x32xf32>
    %c0_i32 = arith.constant 0 : i32
    %c8_i32 = arith.constant 8 : i32
    %36 = arith.muli %c0_i32, %c8_i32 : i32
    %37 = tpu.assume_multiple %36, 8 : i32
    %38 = arith.index_cast %37 : i32 to index
    %c0_25 = arith.constant 0 : index
    %39 = vector.load %arg13[%38, %c0_25] : memref<64x128xf32, #tpu.memory_space<vmem>>, vector<8x128xf32>
    %40 = arith.truncf %33 : vector<8x32xf32> to vector<8x32xbf16>
    %cst_26 = arith.constant dense<0.000000e+00> : vector<8x128xf32>
    %41 = tpu.matmul %40, %31, %cst_26 {dimension_numbers = #tpu.dot_dimension_numbers<[1], [0], [0], [1], [0, 0, 1, 1], [], []>} : vector<8x32xbf16>, vector<32x128xbf16>, vector<8x128xf32> -> vector<8x128xf32>
    %42 = arith.addf %39, %41 : vector<8x128xf32>
    %43 = arith.mulf %42, %8 : vector<8x128xf32>
    %44 = math.tanh %43 : vector<8x128xf32>
    %45 = arith.mulf %44, %8 : vector<8x128xf32>
    %46 = arith.addf %45, %11 : vector<8x128xf32>
    %47 = vector.extract_strided_slice %46 {offsets = [0, 0], sizes = [8, 32], strides = [1, 1]} : vector<8x128xf32> to vector<8x32xf32>
    %48 = vector.extract_strided_slice %46 {offsets = [0, 32], sizes = [8, 32], strides = [1, 1]} : vector<8x128xf32> to vector<8x32xf32>
    %49 = vector.extract_strided_slice %46 {offsets = [0, 64], sizes = [8, 32], strides = [1, 1]} : vector<8x128xf32> to vector<8x32xf32>
    %50 = vector.extract_strided_slice %46 {offsets = [0, 96], sizes = [8, 32], strides = [1, 1]} : vector<8x128xf32> to vector<8x32xf32>
    %51 = arith.mulf %48, %35 : vector<8x32xf32>
    %52 = arith.mulf %47, %49 : vector<8x32xf32>
    %53 = arith.addf %51, %52 : vector<8x32xf32>
    %54 = math.tanh %53 : vector<8x32xf32>
    %55 = arith.mulf %50, %54 : vector<8x32xf32>
    %56 = arith.index_cast %37 : i32 to index
    %c0_27 = arith.constant 0 : index
    %57 = vector.load %arg12[%56, %c0_27] : memref<64x32xf32, #tpu.memory_space<vmem>>, vector<8x32xf32>
    tpu.vector_store %arg12[%56, %c0_27], %55 {strides = array<i32>} : memref<64x32xf32, #tpu.memory_space<vmem>>, vector<8x32xf32>,
    %c1_i32 = arith.constant 1 : i32
    %c8_i32_28 = arith.constant 8 : i32
    %58 = arith.muli %c1_i32, %c8_i32_28 : i32
    %59 = tpu.assume_multiple %58, 8 : i32
    %60 = arith.index_cast %59 : i32 to index
    %c0_29 = arith.constant 0 : index
    %61 = vector.load %arg13[%60, %c0_29] : memref<64x128xf32, #tpu.memory_space<vmem>>, vector<8x128xf32>
    %62 = arith.truncf %55 : vector<8x32xf32> to vector<8x32xbf16>
    %cst_30 = arith.constant dense<0.000000e+00> : vector<8x128xf32>
    %63 = tpu.matmul %62, %31, %cst_30 {dimension_numbers = #tpu.dot_dimension_numbers<[1], [0], [0], [1], [0, 0, 1, 1], [], []>} : vector<8x32xbf16>, vector<32x128xbf16>, vector<8x128xf32> -> vector<8x128xf32>
    %64 = arith.addf %61, %63 : vector<8x128xf32>
    %65 = arith.mulf %64, %8 : vector<8x128xf32>
    %66 = math.tanh %65 : vector<8x128xf32>
    %67 = arith.mulf %66, %8 : vector<8x128xf32>
    %68 = arith.addf %67, %11 : vector<8x128xf32>
    %69 = vector.extract_strided_slice %68 {offsets = [0, 0], sizes = [8, 32], strides = [1, 1]} : vector<8x128xf32> to vector<8x32xf32>
    %70 = vector.extract_strided_slice %68 {offsets = [0, 32], sizes = [8, 32], strides = [1, 1]} : vector<8x128xf32> to vector<8x32xf32>
    %71 = vector.extract_strided_slice %68 {offsets = [0, 64], sizes = [8, 32], strides = [1, 1]} : vector<8x128xf32> to vector<8x32xf32>
    %72 = vector.extract_strided_slice %68 {offsets = [0, 96], sizes = [8, 32], strides = [1, 1]} : vector<8x128xf32> to vector<8x32xf32>
    %73 = arith.mulf %70, %53 : vector<8x32xf32>
    %74 = arith.mulf %69, %71 : vector<8x32xf32>
    %75 = arith.addf %73, %74 : vector<8x32xf32>
    %76 = math.tanh %75 : vector<8x32xf32>
    %77 = arith.mulf %72, %76 : vector<8x32xf32>
    %78 = arith.index_cast %59 : i32 to index
    %c0_31 = arith.constant 0 : index
    %79 = vector.load %arg12[%78, %c0_31] : memref<64x32xf32, #tpu.memory_space<vmem>>, vector<8x32xf32>
    tpu.vector_store %arg12[%78, %c0_31], %77 {strides = array<i32>} : memref<64x32xf32, #tpu.memory_space<vmem>>, vector<8x32xf32>,
    %c2_i32 = arith.constant 2 : i32
    %c8_i32_32 = arith.constant 8 : i32
    %80 = arith.muli %c2_i32, %c8_i32_32 : i32
    %81 = tpu.assume_multiple %80, 8 : i32
    %82 = arith.index_cast %81 : i32 to index
    %c0_33 = arith.constant 0 : index
    %83 = vector.load %arg13[%82, %c0_33] : memref<64x128xf32, #tpu.memory_space<vmem>>, vector<8x128xf32>
    %84 = arith.truncf %77 : vector<8x32xf32> to vector<8x32xbf16>
    %cst_34 = arith.constant dense<0.000000e+00> : vector<8x128xf32>
    %85 = tpu.matmul %84, %31, %cst_34 {dimension_numbers = #tpu.dot_dimension_numbers<[1], [0], [0], [1], [0, 0, 1, 1], [], []>} : vector<8x32xbf16>, vector<32x128xbf16>, vector<8x128xf32> -> vector<8x128xf32>
    %86 = arith.addf %83, %85 : vector<8x128xf32>
    %87 = arith.mulf %86, %8 : vector<8x128xf32>
    %88 = math.tanh %87 : vector<8x128xf32>
    %89 = arith.mulf %88, %8 : vector<8x128xf32>
    %90 = arith.addf %89, %11 : vector<8x128xf32>
    %91 = vector.extract_strided_slice %90 {offsets = [0, 0], sizes = [8, 32], strides = [1, 1]} : vector<8x128xf32> to vector<8x32xf32>
    %92 = vector.extract_strided_slice %90 {offsets = [0, 32], sizes = [8, 32], strides = [1, 1]} : vector<8x128xf32> to vector<8x32xf32>
    %93 = vector.extract_strided_slice %90 {offsets = [0, 64], sizes = [8, 32], strides = [1, 1]} : vector<8x128xf32> to vector<8x32xf32>
    %94 = vector.extract_strided_slice %90 {offsets = [0, 96], sizes = [8, 32], strides = [1, 1]} : vector<8x128xf32> to vector<8x32xf32>
    %95 = arith.mulf %92, %75 : vector<8x32xf32>
    %96 = arith.mulf %91, %93 : vector<8x32xf32>
    %97 = arith.addf %95, %96 : vector<8x32xf32>
    %98 = math.tanh %97 : vector<8x32xf32>
    %99 = arith.mulf %94, %98 : vector<8x32xf32>
    %100 = arith.index_cast %81 : i32 to index
    %c0_35 = arith.constant 0 : index
    %101 = vector.load %arg12[%100, %c0_35] : memref<64x32xf32, #tpu.memory_space<vmem>>, vector<8x32xf32>
    tpu.vector_store %arg12[%100, %c0_35], %99 {strides = array<i32>} : memref<64x32xf32, #tpu.memory_space<vmem>>, vector<8x32xf32>,
    %c3_i32 = arith.constant 3 : i32
    %c8_i32_36 = arith.constant 8 : i32
    %102 = arith.muli %c3_i32, %c8_i32_36 : i32
    %103 = tpu.assume_multiple %102, 8 : i32
    %104 = arith.index_cast %103 : i32 to index
    %c0_37 = arith.constant 0 : index
    %105 = vector.load %arg13[%104, %c0_37] : memref<64x128xf32, #tpu.memory_space<vmem>>, vector<8x128xf32>
    %106 = arith.truncf %99 : vector<8x32xf32> to vector<8x32xbf16>
    %cst_38 = arith.constant dense<0.000000e+00> : vector<8x128xf32>
    %107 = tpu.matmul %106, %31, %cst_38 {dimension_numbers = #tpu.dot_dimension_numbers<[1], [0], [0], [1], [0, 0, 1, 1], [], []>} : vector<8x32xbf16>, vector<32x128xbf16>, vector<8x128xf32> -> vector<8x128xf32>
    %108 = arith.addf %105, %107 : vector<8x128xf32>
    %109 = arith.mulf %108, %8 : vector<8x128xf32>
    %110 = math.tanh %109 : vector<8x128xf32>
    %111 = arith.mulf %110, %8 : vector<8x128xf32>
    %112 = arith.addf %111, %11 : vector<8x128xf32>
    %113 = vector.extract_strided_slice %112 {offsets = [0, 0], sizes = [8, 32], strides = [1, 1]} : vector<8x128xf32> to vector<8x32xf32>
    %114 = vector.extract_strided_slice %112 {offsets = [0, 32], sizes = [8, 32], strides = [1, 1]} : vector<8x128xf32> to vector<8x32xf32>
    %115 = vector.extract_strided_slice %112 {offsets = [0, 64], sizes = [8, 32], strides = [1, 1]} : vector<8x128xf32> to vector<8x32xf32>
    %116 = vector.extract_strided_slice %112 {offsets = [0, 96], sizes = [8, 32], strides = [1, 1]} : vector<8x128xf32> to vector<8x32xf32>
    %117 = arith.mulf %114, %97 : vector<8x32xf32>
    %118 = arith.mulf %113, %115 : vector<8x32xf32>
    %119 = arith.addf %117, %118 : vector<8x32xf32>
    %120 = math.tanh %119 : vector<8x32xf32>
    %121 = arith.mulf %116, %120 : vector<8x32xf32>
    %122 = arith.index_cast %103 : i32 to index
    %c0_39 = arith.constant 0 : index
    %123 = vector.load %arg12[%122, %c0_39] : memref<64x32xf32, #tpu.memory_space<vmem>>, vector<8x32xf32>
    tpu.vector_store %arg12[%122, %c0_39], %121 {strides = array<i32>} : memref<64x32xf32, #tpu.memory_space<vmem>>, vector<8x32xf32>,
    %c4_i32 = arith.constant 4 : i32
    %c8_i32_40 = arith.constant 8 : i32
    %124 = arith.muli %c4_i32, %c8_i32_40 : i32
    %125 = tpu.assume_multiple %124, 8 : i32
    %126 = arith.index_cast %125 : i32 to index
    %c0_41 = arith.constant 0 : index
    %127 = vector.load %arg13[%126, %c0_41] : memref<64x128xf32, #tpu.memory_space<vmem>>, vector<8x128xf32>
    %128 = arith.truncf %121 : vector<8x32xf32> to vector<8x32xbf16>
    %cst_42 = arith.constant dense<0.000000e+00> : vector<8x128xf32>
    %129 = tpu.matmul %128, %31, %cst_42 {dimension_numbers = #tpu.dot_dimension_numbers<[1], [0], [0], [1], [0, 0, 1, 1], [], []>} : vector<8x32xbf16>, vector<32x128xbf16>, vector<8x128xf32> -> vector<8x128xf32>
    %130 = arith.addf %127, %129 : vector<8x128xf32>
    %131 = arith.mulf %130, %8 : vector<8x128xf32>
    %132 = math.tanh %131 : vector<8x128xf32>
    %133 = arith.mulf %132, %8 : vector<8x128xf32>
    %134 = arith.addf %133, %11 : vector<8x128xf32>
    %135 = vector.extract_strided_slice %134 {offsets = [0, 0], sizes = [8, 32], strides = [1, 1]} : vector<8x128xf32> to vector<8x32xf32>
    %136 = vector.extract_strided_slice %134 {offsets = [0, 32], sizes = [8, 32], strides = [1, 1]} : vector<8x128xf32> to vector<8x32xf32>
    %137 = vector.extract_strided_slice %134 {offsets = [0, 64], sizes = [8, 32], strides = [1, 1]} : vector<8x128xf32> to vector<8x32xf32>
    %138 = vector.extract_strided_slice %134 {offsets = [0, 96], sizes = [8, 32], strides = [1, 1]} : vector<8x128xf32> to vector<8x32xf32>
    %139 = arith.mulf %136, %119 : vector<8x32xf32>
    %140 = arith.mulf %135, %137 : vector<8x32xf32>
    %141 = arith.addf %139, %140 : vector<8x32xf32>
    %142 = math.tanh %141 : vector<8x32xf32>
    %143 = arith.mulf %138, %142 : vector<8x32xf32>
    %144 = arith.index_cast %125 : i32 to index
    %c0_43 = arith.constant 0 : index
    %145 = vector.load %arg12[%144, %c0_43] : memref<64x32xf32, #tpu.memory_space<vmem>>, vector<8x32xf32>
    tpu.vector_store %arg12[%144, %c0_43], %143 {strides = array<i32>} : memref<64x32xf32, #tpu.memory_space<vmem>>, vector<8x32xf32>,
    %c5_i32 = arith.constant 5 : i32
    %c8_i32_44 = arith.constant 8 : i32
    %146 = arith.muli %c5_i32, %c8_i32_44 : i32
    %147 = tpu.assume_multiple %146, 8 : i32
    %148 = arith.index_cast %147 : i32 to index
    %c0_45 = arith.constant 0 : index
    %149 = vector.load %arg13[%148, %c0_45] : memref<64x128xf32, #tpu.memory_space<vmem>>, vector<8x128xf32>
    %150 = arith.truncf %143 : vector<8x32xf32> to vector<8x32xbf16>
    %cst_46 = arith.constant dense<0.000000e+00> : vector<8x128xf32>
    %151 = tpu.matmul %150, %31, %cst_46 {dimension_numbers = #tpu.dot_dimension_numbers<[1], [0], [0], [1], [0, 0, 1, 1], [], []>} : vector<8x32xbf16>, vector<32x128xbf16>, vector<8x128xf32> -> vector<8x128xf32>
    %152 = arith.addf %149, %151 : vector<8x128xf32>
    %153 = arith.mulf %152, %8 : vector<8x128xf32>
    %154 = math.tanh %153 : vector<8x128xf32>
    %155 = arith.mulf %154, %8 : vector<8x128xf32>
    %156 = arith.addf %155, %11 : vector<8x128xf32>
    %157 = vector.extract_strided_slice %156 {offsets = [0, 0], sizes = [8, 32], strides = [1, 1]} : vector<8x128xf32> to vector<8x32xf32>
    %158 = vector.extract_strided_slice %156 {offsets = [0, 32], sizes = [8, 32], strides = [1, 1]} : vector<8x128xf32> to vector<8x32xf32>
    %159 = vector.extract_strided_slice %156 {offsets = [0, 64], sizes = [8, 32], strides = [1, 1]} : vector<8x128xf32> to vector<8x32xf32>
    %160 = vector.extract_strided_slice %156 {offsets = [0, 96], sizes = [8, 32], strides = [1, 1]} : vector<8x128xf32> to vector<8x32xf32>
    %161 = arith.mulf %158, %141 : vector<8x32xf32>
    %162 = arith.mulf %157, %159 : vector<8x32xf32>
    %163 = arith.addf %161, %162 : vector<8x32xf32>
    %164 = math.tanh %163 : vector<8x32xf32>
    %165 = arith.mulf %160, %164 : vector<8x32xf32>
    %166 = arith.index_cast %147 : i32 to index
    %c0_47 = arith.constant 0 : index
    %167 = vector.load %arg12[%166, %c0_47] : memref<64x32xf32, #tpu.memory_space<vmem>>, vector<8x32xf32>
    tpu.vector_store %arg12[%166, %c0_47], %165 {strides = array<i32>} : memref<64x32xf32, #tpu.memory_space<vmem>>, vector<8x32xf32>,
    %c6_i32 = arith.constant 6 : i32
    %c8_i32_48 = arith.constant 8 : i32
    %168 = arith.muli %c6_i32, %c8_i32_48 : i32
    %169 = tpu.assume_multiple %168, 8 : i32
    %170 = arith.index_cast %169 : i32 to index
    %c0_49 = arith.constant 0 : index
    %171 = vector.load %arg13[%170, %c0_49] : memref<64x128xf32, #tpu.memory_space<vmem>>, vector<8x128xf32>
    %172 = arith.truncf %165 : vector<8x32xf32> to vector<8x32xbf16>
    %cst_50 = arith.constant dense<0.000000e+00> : vector<8x128xf32>
    %173 = tpu.matmul %172, %31, %cst_50 {dimension_numbers = #tpu.dot_dimension_numbers<[1], [0], [0], [1], [0, 0, 1, 1], [], []>} : vector<8x32xbf16>, vector<32x128xbf16>, vector<8x128xf32> -> vector<8x128xf32>
    %174 = arith.addf %171, %173 : vector<8x128xf32>
    %175 = arith.mulf %174, %8 : vector<8x128xf32>
    %176 = math.tanh %175 : vector<8x128xf32>
    %177 = arith.mulf %176, %8 : vector<8x128xf32>
    %178 = arith.addf %177, %11 : vector<8x128xf32>
    %179 = vector.extract_strided_slice %178 {offsets = [0, 0], sizes = [8, 32], strides = [1, 1]} : vector<8x128xf32> to vector<8x32xf32>
    %180 = vector.extract_strided_slice %178 {offsets = [0, 32], sizes = [8, 32], strides = [1, 1]} : vector<8x128xf32> to vector<8x32xf32>
    %181 = vector.extract_strided_slice %178 {offsets = [0, 64], sizes = [8, 32], strides = [1, 1]} : vector<8x128xf32> to vector<8x32xf32>
    %182 = vector.extract_strided_slice %178 {offsets = [0, 96], sizes = [8, 32], strides = [1, 1]} : vector<8x128xf32> to vector<8x32xf32>
    %183 = arith.mulf %180, %163 : vector<8x32xf32>
    %184 = arith.mulf %179, %181 : vector<8x32xf32>
    %185 = arith.addf %183, %184 : vector<8x32xf32>
    %186 = math.tanh %185 : vector<8x32xf32>
    %187 = arith.mulf %182, %186 : vector<8x32xf32>
    %188 = arith.index_cast %169 : i32 to index
    %c0_51 = arith.constant 0 : index
    %189 = vector.load %arg12[%188, %c0_51] : memref<64x32xf32, #tpu.memory_space<vmem>>, vector<8x32xf32>
    tpu.vector_store %arg12[%188, %c0_51], %187 {strides = array<i32>} : memref<64x32xf32, #tpu.memory_space<vmem>>, vector<8x32xf32>,
    %c7_i32 = arith.constant 7 : i32
    %c8_i32_52 = arith.constant 8 : i32
    %190 = arith.muli %c7_i32, %c8_i32_52 : i32
    %191 = tpu.assume_multiple %190, 8 : i32
    %192 = arith.index_cast %191 : i32 to index
    %c0_53 = arith.constant 0 : index
    %193 = vector.load %arg13[%192, %c0_53] : memref<64x128xf32, #tpu.memory_space<vmem>>, vector<8x128xf32>
    %194 = arith.truncf %187 : vector<8x32xf32> to vector<8x32xbf16>
    %cst_54 = arith.constant dense<0.000000e+00> : vector<8x128xf32>
    %195 = tpu.matmul %194, %31, %cst_54 {dimension_numbers = #tpu.dot_dimension_numbers<[1], [0], [0], [1], [0, 0, 1, 1], [], []>} : vector<8x32xbf16>, vector<32x128xbf16>, vector<8x128xf32> -> vector<8x128xf32>
    %196 = arith.addf %193, %195 : vector<8x128xf32>
    %197 = arith.mulf %196, %8 : vector<8x128xf32>
    %198 = math.tanh %197 : vector<8x128xf32>
    %199 = arith.mulf %198, %8 : vector<8x128xf32>
    %200 = arith.addf %199, %11 : vector<8x128xf32>
    %201 = vector.extract_strided_slice %200 {offsets = [0, 0], sizes = [8, 32], strides = [1, 1]} : vector<8x128xf32> to vector<8x32xf32>
    %202 = vector.extract_strided_slice %200 {offsets = [0, 32], sizes = [8, 32], strides = [1, 1]} : vector<8x128xf32> to vector<8x32xf32>
    %203 = vector.extract_strided_slice %200 {offsets = [0, 64], sizes = [8, 32], strides = [1, 1]} : vector<8x128xf32> to vector<8x32xf32>
    %204 = vector.extract_strided_slice %200 {offsets = [0, 96], sizes = [8, 32], strides = [1, 1]} : vector<8x128xf32> to vector<8x32xf32>
    %205 = arith.mulf %202, %185 : vector<8x32xf32>
    %206 = arith.mulf %201, %203 : vector<8x32xf32>
    %207 = arith.addf %205, %206 : vector<8x32xf32>
    %208 = math.tanh %207 : vector<8x32xf32>
    %209 = arith.mulf %204, %208 : vector<8x32xf32>
    %210 = arith.index_cast %191 : i32 to index
    %c0_55 = arith.constant 0 : index
    %211 = vector.load %arg12[%210, %c0_55] : memref<64x32xf32, #tpu.memory_space<vmem>>, vector<8x32xf32>
    tpu.vector_store %arg12[%210, %c0_55], %209 {strides = array<i32>} : memref<64x32xf32, #tpu.memory_space<vmem>>, vector<8x32xf32>,
    %c8_i32_56 = arith.constant 8 : i32
    %c0_57 = arith.constant 0 : index
    %c0_58 = arith.constant 0 : index
    %c0_59 = arith.constant 0 : index
    %212 = vector.load %arg10[%c0_57, %c0_58, %c0_59] : memref<2x8x32xf32, #tpu.memory_space<vmem>>, vector<1x8x32xf32>
    %213 = vector.shape_cast %212 : vector<1x8x32xf32> to vector<8x32xf32>
    %214 = vector.shape_cast %209 : vector<8x32xf32> to vector<1x8x32xf32>
    tpu.vector_store %arg10[%c0_57, %c0_58, %c0_59], %214 {strides = array<i32>} : memref<2x8x32xf32, #tpu.memory_space<vmem>>, vector<1x8x32xf32>,
    %c0_60 = arith.constant 0 : index
    %c0_61 = arith.constant 0 : index
    %c0_62 = arith.constant 0 : index
    %215 = vector.load %arg11[%c0_60, %c0_61, %c0_62] : memref<2x8x32xf32, #tpu.memory_space<vmem>>, vector<1x8x32xf32>
    %216 = vector.shape_cast %215 : vector<1x8x32xf32> to vector<8x32xf32>
    %217 = vector.shape_cast %207 : vector<8x32xf32> to vector<1x8x32xf32>
    tpu.vector_store %arg11[%c0_60, %c0_61, %c0_62], %217 {strides = array<i32>} : memref<2x8x32xf32, #tpu.memory_space<vmem>>, vector<1x8x32xf32>,
    %c0_63 = arith.constant 0 : index
    %c0_64 = arith.constant 0 : index
    %218 = vector.load %arg12[%c0_63, %c0_64] : memref<64x32xf32, #tpu.memory_space<vmem>>, vector<64x32xf32>
    %219 = arith.truncf %218 : vector<64x32xf32> to vector<64x32xbf16>
    %c1 = arith.constant 1 : index
    %c0_65 = arith.constant 0 : index
    %c0_66 = arith.constant 0 : index
    %220 = vector.load %arg2[%c1, %c0_65, %c0_66] : memref<2x32x128xbf16, #tpu.memory_space<vmem>>, vector<1x32x128xbf16>
    %221 = vector.shape_cast %220 : vector<1x32x128xbf16> to vector<32x128xbf16>
    %cst_67 = arith.constant dense<0.000000e+00> : vector<64x128xf32>
    %222 = tpu.matmul %219, %221, %cst_67 {dimension_numbers = #tpu.dot_dimension_numbers<[1], [0], [0], [1], [0, 0, 1, 1], [], []>} : vector<64x32xbf16>, vector<32x128xbf16>, vector<64x128xf32> -> vector<64x128xf32>
    %c1_68 = arith.constant 1 : index
    %c0_69 = arith.constant 0 : index
    %c0_70 = arith.constant 0 : index
    %223 = vector.load %arg4[%c1_68, %c0_69, %c0_70] : memref<2x1x128xf32, #tpu.memory_space<vmem>>, vector<1x1x128xf32>
    %224 = vector.shape_cast %223 : vector<1x1x128xf32> to vector<1x128xf32>
    %225 = vector.broadcast %224 : vector<1x128xf32> to vector<64x128xf32>
    %226 = arith.addf %222, %225 : vector<64x128xf32>
    %c0_71 = arith.constant 0 : index
    %c0_72 = arith.constant 0 : index
    %227 = vector.load %arg13[%c0_71, %c0_72] : memref<64x128xf32, #tpu.memory_space<vmem>>, vector<64x128xf32>
    tpu.vector_store %arg13[%c0_71, %c0_72], %226 {strides = array<i32>} : memref<64x128xf32, #tpu.memory_space<vmem>>, vector<64x128xf32>,
    %c1_73 = arith.constant 1 : index
    %c0_74 = arith.constant 0 : index
    %c0_75 = arith.constant 0 : index
    %228 = vector.load %arg3[%c1_73, %c0_74, %c0_75] : memref<2x32x128xbf16, #tpu.memory_space<vmem>>, vector<1x32x128xbf16>
    %229 = vector.shape_cast %228 : vector<1x32x128xbf16> to vector<32x128xbf16>
    %c1_76 = arith.constant 1 : index
    %c0_77 = arith.constant 0 : index
    %c0_78 = arith.constant 0 : index
    %230 = vector.load %arg5[%c1_76, %c0_77, %c0_78] : memref<2x8x32xf32, #tpu.memory_space<vmem>>, vector<1x8x32xf32>
    %231 = vector.shape_cast %230 : vector<1x8x32xf32> to vector<8x32xf32>
    %c1_79 = arith.constant 1 : index
    %c0_80 = arith.constant 0 : index
    %c0_81 = arith.constant 0 : index
    %232 = vector.load %arg6[%c1_79, %c0_80, %c0_81] : memref<2x8x32xf32, #tpu.memory_space<vmem>>, vector<1x8x32xf32>
    %233 = vector.shape_cast %232 : vector<1x8x32xf32> to vector<8x32xf32>
    %c0_i32_82 = arith.constant 0 : i32
    %c8_i32_83 = arith.constant 8 : i32
    %234 = arith.muli %c0_i32_82, %c8_i32_83 : i32
    %235 = tpu.assume_multiple %234, 8 : i32
    %236 = arith.index_cast %235 : i32 to index
    %c0_84 = arith.constant 0 : index
    %237 = vector.load %arg13[%236, %c0_84] : memref<64x128xf32, #tpu.memory_space<vmem>>, vector<8x128xf32>
    %238 = arith.truncf %231 : vector<8x32xf32> to vector<8x32xbf16>
    %cst_85 = arith.constant dense<0.000000e+00> : vector<8x128xf32>
    %239 = tpu.matmul %238, %229, %cst_85 {dimension_numbers = #tpu.dot_dimension_numbers<[1], [0], [0], [1], [0, 0, 1, 1], [], []>} : vector<8x32xbf16>, vector<32x128xbf16>, vector<8x128xf32> -> vector<8x128xf32>
    %240 = arith.addf %237, %239 : vector<8x128xf32>
    %241 = arith.mulf %240, %8 : vector<8x128xf32>
    %242 = math.tanh %241 : vector<8x128xf32>
    %243 = arith.mulf %242, %8 : vector<8x128xf32>
    %244 = arith.addf %243, %11 : vector<8x128xf32>
    %245 = vector.extract_strided_slice %244 {offsets = [0, 0], sizes = [8, 32], strides = [1, 1]} : vector<8x128xf32> to vector<8x32xf32>
    %246 = vector.extract_strided_slice %244 {offsets = [0, 32], sizes = [8, 32], strides = [1, 1]} : vector<8x128xf32> to vector<8x32xf32>
    %247 = vector.extract_strided_slice %244 {offsets = [0, 64], sizes = [8, 32], strides = [1, 1]} : vector<8x128xf32> to vector<8x32xf32>
    %248 = vector.extract_strided_slice %244 {offsets = [0, 96], sizes = [8, 32], strides = [1, 1]} : vector<8x128xf32> to vector<8x32xf32>
    %249 = arith.mulf %246, %233 : vector<8x32xf32>
    %250 = arith.mulf %245, %247 : vector<8x32xf32>
    %251 = arith.addf %249, %250 : vector<8x32xf32>
    %252 = math.tanh %251 : vector<8x32xf32>
    %253 = arith.mulf %248, %252 : vector<8x32xf32>
    %254 = arith.index_cast %235 : i32 to index
    %c0_86 = arith.constant 0 : index
    %255 = vector.load %arg12[%254, %c0_86] : memref<64x32xf32, #tpu.memory_space<vmem>>, vector<8x32xf32>
    tpu.vector_store %arg12[%254, %c0_86], %253 {strides = array<i32>} : memref<64x32xf32, #tpu.memory_space<vmem>>, vector<8x32xf32>,
    %c1_i32_87 = arith.constant 1 : i32
    %c8_i32_88 = arith.constant 8 : i32
    %256 = arith.muli %c1_i32_87, %c8_i32_88 : i32
    %257 = tpu.assume_multiple %256, 8 : i32
    %258 = arith.index_cast %257 : i32 to index
    %c0_89 = arith.constant 0 : index
    %259 = vector.load %arg13[%258, %c0_89] : memref<64x128xf32, #tpu.memory_space<vmem>>, vector<8x128xf32>
    %260 = arith.truncf %253 : vector<8x32xf32> to vector<8x32xbf16>
    %cst_90 = arith.constant dense<0.000000e+00> : vector<8x128xf32>
    %261 = tpu.matmul %260, %229, %cst_90 {dimension_numbers = #tpu.dot_dimension_numbers<[1], [0], [0], [1], [0, 0, 1, 1], [], []>} : vector<8x32xbf16>, vector<32x128xbf16>, vector<8x128xf32> -> vector<8x128xf32>
    %262 = arith.addf %259, %261 : vector<8x128xf32>
    %263 = arith.mulf %262, %8 : vector<8x128xf32>
    %264 = math.tanh %263 : vector<8x128xf32>
    %265 = arith.mulf %264, %8 : vector<8x128xf32>
    %266 = arith.addf %265, %11 : vector<8x128xf32>
    %267 = vector.extract_strided_slice %266 {offsets = [0, 0], sizes = [8, 32], strides = [1, 1]} : vector<8x128xf32> to vector<8x32xf32>
    %268 = vector.extract_strided_slice %266 {offsets = [0, 32], sizes = [8, 32], strides = [1, 1]} : vector<8x128xf32> to vector<8x32xf32>
    %269 = vector.extract_strided_slice %266 {offsets = [0, 64], sizes = [8, 32], strides = [1, 1]} : vector<8x128xf32> to vector<8x32xf32>
    %270 = vector.extract_strided_slice %266 {offsets = [0, 96], sizes = [8, 32], strides = [1, 1]} : vector<8x128xf32> to vector<8x32xf32>
    %271 = arith.mulf %268, %251 : vector<8x32xf32>
    %272 = arith.mulf %267, %269 : vector<8x32xf32>
    %273 = arith.addf %271, %272 : vector<8x32xf32>
    %274 = math.tanh %273 : vector<8x32xf32>
    %275 = arith.mulf %270, %274 : vector<8x32xf32>
    %276 = arith.index_cast %257 : i32 to index
    %c0_91 = arith.constant 0 : index
    %277 = vector.load %arg12[%276, %c0_91] : memref<64x32xf32, #tpu.memory_space<vmem>>, vector<8x32xf32>
    tpu.vector_store %arg12[%276, %c0_91], %275 {strides = array<i32>} : memref<64x32xf32, #tpu.memory_space<vmem>>, vector<8x32xf32>,
    %c2_i32_92 = arith.constant 2 : i32
    %c8_i32_93 = arith.constant 8 : i32
    %278 = arith.muli %c2_i32_92, %c8_i32_93 : i32
    %279 = tpu.assume_multiple %278, 8 : i32
    %280 = arith.index_cast %279 : i32 to index
    %c0_94 = arith.constant 0 : index
    %281 = vector.load %arg13[%280, %c0_94] : memref<64x128xf32, #tpu.memory_space<vmem>>, vector<8x128xf32>
    %282 = arith.truncf %275 : vector<8x32xf32> to vector<8x32xbf16>
    %cst_95 = arith.constant dense<0.000000e+00> : vector<8x128xf32>
    %283 = tpu.matmul %282, %229, %cst_95 {dimension_numbers = #tpu.dot_dimension_numbers<[1], [0], [0], [1], [0, 0, 1, 1], [], []>} : vector<8x32xbf16>, vector<32x128xbf16>, vector<8x128xf32> -> vector<8x128xf32>
    %284 = arith.addf %281, %283 : vector<8x128xf32>
    %285 = arith.mulf %284, %8 : vector<8x128xf32>
    %286 = math.tanh %285 : vector<8x128xf32>
    %287 = arith.mulf %286, %8 : vector<8x128xf32>
    %288 = arith.addf %287, %11 : vector<8x128xf32>
    %289 = vector.extract_strided_slice %288 {offsets = [0, 0], sizes = [8, 32], strides = [1, 1]} : vector<8x128xf32> to vector<8x32xf32>
    %290 = vector.extract_strided_slice %288 {offsets = [0, 32], sizes = [8, 32], strides = [1, 1]} : vector<8x128xf32> to vector<8x32xf32>
    %291 = vector.extract_strided_slice %288 {offsets = [0, 64], sizes = [8, 32], strides = [1, 1]} : vector<8x128xf32> to vector<8x32xf32>
    %292 = vector.extract_strided_slice %288 {offsets = [0, 96], sizes = [8, 32], strides = [1, 1]} : vector<8x128xf32> to vector<8x32xf32>
    %293 = arith.mulf %290, %273 : vector<8x32xf32>
    %294 = arith.mulf %289, %291 : vector<8x32xf32>
    %295 = arith.addf %293, %294 : vector<8x32xf32>
    %296 = math.tanh %295 : vector<8x32xf32>
    %297 = arith.mulf %292, %296 : vector<8x32xf32>
    %298 = arith.index_cast %279 : i32 to index
    %c0_96 = arith.constant 0 : index
    %299 = vector.load %arg12[%298, %c0_96] : memref<64x32xf32, #tpu.memory_space<vmem>>, vector<8x32xf32>
    tpu.vector_store %arg12[%298, %c0_96], %297 {strides = array<i32>} : memref<64x32xf32, #tpu.memory_space<vmem>>, vector<8x32xf32>,
    %c3_i32_97 = arith.constant 3 : i32
    %c8_i32_98 = arith.constant 8 : i32
    %300 = arith.muli %c3_i32_97, %c8_i32_98 : i32
    %301 = tpu.assume_multiple %300, 8 : i32
    %302 = arith.index_cast %301 : i32 to index
    %c0_99 = arith.constant 0 : index
    %303 = vector.load %arg13[%302, %c0_99] : memref<64x128xf32, #tpu.memory_space<vmem>>, vector<8x128xf32>
    %304 = arith.truncf %297 : vector<8x32xf32> to vector<8x32xbf16>
    %cst_100 = arith.constant dense<0.000000e+00> : vector<8x128xf32>
    %305 = tpu.matmul %304, %229, %cst_100 {dimension_numbers = #tpu.dot_dimension_numbers<[1], [0], [0], [1], [0, 0, 1, 1], [], []>} : vector<8x32xbf16>, vector<32x128xbf16>, vector<8x128xf32> -> vector<8x128xf32>
    %306 = arith.addf %303, %305 : vector<8x128xf32>
    %307 = arith.mulf %306, %8 : vector<8x128xf32>
    %308 = math.tanh %307 : vector<8x128xf32>
    %309 = arith.mulf %308, %8 : vector<8x128xf32>
    %310 = arith.addf %309, %11 : vector<8x128xf32>
    %311 = vector.extract_strided_slice %310 {offsets = [0, 0], sizes = [8, 32], strides = [1, 1]} : vector<8x128xf32> to vector<8x32xf32>
    %312 = vector.extract_strided_slice %310 {offsets = [0, 32], sizes = [8, 32], strides = [1, 1]} : vector<8x128xf32> to vector<8x32xf32>
    %313 = vector.extract_strided_slice %310 {offsets = [0, 64], sizes = [8, 32], strides = [1, 1]} : vector<8x128xf32> to vector<8x32xf32>
    %314 = vector.extract_strided_slice %310 {offsets = [0, 96], sizes = [8, 32], strides = [1, 1]} : vector<8x128xf32> to vector<8x32xf32>
    %315 = arith.mulf %312, %295 : vector<8x32xf32>
    %316 = arith.mulf %311, %313 : vector<8x32xf32>
    %317 = arith.addf %315, %316 : vector<8x32xf32>
    %318 = math.tanh %317 : vector<8x32xf32>
    %319 = arith.mulf %314, %318 : vector<8x32xf32>
    %320 = arith.index_cast %301 : i32 to index
    %c0_101 = arith.constant 0 : index
    %321 = vector.load %arg12[%320, %c0_101] : memref<64x32xf32, #tpu.memory_space<vmem>>, vector<8x32xf32>
    tpu.vector_store %arg12[%320, %c0_101], %319 {strides = array<i32>} : memref<64x32xf32, #tpu.memory_space<vmem>>, vector<8x32xf32>,
    %c4_i32_102 = arith.constant 4 : i32
    %c8_i32_103 = arith.constant 8 : i32
    %322 = arith.muli %c4_i32_102, %c8_i32_103 : i32
    %323 = tpu.assume_multiple %322, 8 : i32
    %324 = arith.index_cast %323 : i32 to index
    %c0_104 = arith.constant 0 : index
    %325 = vector.load %arg13[%324, %c0_104] : memref<64x128xf32, #tpu.memory_space<vmem>>, vector<8x128xf32>
    %326 = arith.truncf %319 : vector<8x32xf32> to vector<8x32xbf16>
    %cst_105 = arith.constant dense<0.000000e+00> : vector<8x128xf32>
    %327 = tpu.matmul %326, %229, %cst_105 {dimension_numbers = #tpu.dot_dimension_numbers<[1], [0], [0], [1], [0, 0, 1, 1], [], []>} : vector<8x32xbf16>, vector<32x128xbf16>, vector<8x128xf32> -> vector<8x128xf32>
    %328 = arith.addf %325, %327 : vector<8x128xf32>
    %329 = arith.mulf %328, %8 : vector<8x128xf32>
    %330 = math.tanh %329 : vector<8x128xf32>
    %331 = arith.mulf %330, %8 : vector<8x128xf32>
    %332 = arith.addf %331, %11 : vector<8x128xf32>
    %333 = vector.extract_strided_slice %332 {offsets = [0, 0], sizes = [8, 32], strides = [1, 1]} : vector<8x128xf32> to vector<8x32xf32>
    %334 = vector.extract_strided_slice %332 {offsets = [0, 32], sizes = [8, 32], strides = [1, 1]} : vector<8x128xf32> to vector<8x32xf32>
    %335 = vector.extract_strided_slice %332 {offsets = [0, 64], sizes = [8, 32], strides = [1, 1]} : vector<8x128xf32> to vector<8x32xf32>
    %336 = vector.extract_strided_slice %332 {offsets = [0, 96], sizes = [8, 32], strides = [1, 1]} : vector<8x128xf32> to vector<8x32xf32>
    %337 = arith.mulf %334, %317 : vector<8x32xf32>
    %338 = arith.mulf %333, %335 : vector<8x32xf32>
    %339 = arith.addf %337, %338 : vector<8x32xf32>
    %340 = math.tanh %339 : vector<8x32xf32>
    %341 = arith.mulf %336, %340 : vector<8x32xf32>
    %342 = arith.index_cast %323 : i32 to index
    %c0_106 = arith.constant 0 : index
    %343 = vector.load %arg12[%342, %c0_106] : memref<64x32xf32, #tpu.memory_space<vmem>>, vector<8x32xf32>
    tpu.vector_store %arg12[%342, %c0_106], %341 {strides = array<i32>} : memref<64x32xf32, #tpu.memory_space<vmem>>, vector<8x32xf32>,
    %c5_i32_107 = arith.constant 5 : i32
    %c8_i32_108 = arith.constant 8 : i32
    %344 = arith.muli %c5_i32_107, %c8_i32_108 : i32
    %345 = tpu.assume_multiple %344, 8 : i32
    %346 = arith.index_cast %345 : i32 to index
    %c0_109 = arith.constant 0 : index
    %347 = vector.load %arg13[%346, %c0_109] : memref<64x128xf32, #tpu.memory_space<vmem>>, vector<8x128xf32>
    %348 = arith.truncf %341 : vector<8x32xf32> to vector<8x32xbf16>
    %cst_110 = arith.constant dense<0.000000e+00> : vector<8x128xf32>
    %349 = tpu.matmul %348, %229, %cst_110 {dimension_numbers = #tpu.dot_dimension_numbers<[1], [0], [0], [1], [0, 0, 1, 1], [], []>} : vector<8x32xbf16>, vector<32x128xbf16>, vector<8x128xf32> -> vector<8x128xf32>
    %350 = arith.addf %347, %349 : vector<8x128xf32>
    %351 = arith.mulf %350, %8 : vector<8x128xf32>
    %352 = math.tanh %351 : vector<8x128xf32>
    %353 = arith.mulf %352, %8 : vector<8x128xf32>
    %354 = arith.addf %353, %11 : vector<8x128xf32>
    %355 = vector.extract_strided_slice %354 {offsets = [0, 0], sizes = [8, 32], strides = [1, 1]} : vector<8x128xf32> to vector<8x32xf32>
    %356 = vector.extract_strided_slice %354 {offsets = [0, 32], sizes = [8, 32], strides = [1, 1]} : vector<8x128xf32> to vector<8x32xf32>
    %357 = vector.extract_strided_slice %354 {offsets = [0, 64], sizes = [8, 32], strides = [1, 1]} : vector<8x128xf32> to vector<8x32xf32>
    %358 = vector.extract_strided_slice %354 {offsets = [0, 96], sizes = [8, 32], strides = [1, 1]} : vector<8x128xf32> to vector<8x32xf32>
    %359 = arith.mulf %356, %339 : vector<8x32xf32>
    %360 = arith.mulf %355, %357 : vector<8x32xf32>
    %361 = arith.addf %359, %360 : vector<8x32xf32>
    %362 = math.tanh %361 : vector<8x32xf32>
    %363 = arith.mulf %358, %362 : vector<8x32xf32>
    %364 = arith.index_cast %345 : i32 to index
    %c0_111 = arith.constant 0 : index
    %365 = vector.load %arg12[%364, %c0_111] : memref<64x32xf32, #tpu.memory_space<vmem>>, vector<8x32xf32>
    tpu.vector_store %arg12[%364, %c0_111], %363 {strides = array<i32>} : memref<64x32xf32, #tpu.memory_space<vmem>>, vector<8x32xf32>,
    %c6_i32_112 = arith.constant 6 : i32
    %c8_i32_113 = arith.constant 8 : i32
    %366 = arith.muli %c6_i32_112, %c8_i32_113 : i32
    %367 = tpu.assume_multiple %366, 8 : i32
    %368 = arith.index_cast %367 : i32 to index
    %c0_114 = arith.constant 0 : index
    %369 = vector.load %arg13[%368, %c0_114] : memref<64x128xf32, #tpu.memory_space<vmem>>, vector<8x128xf32>
    %370 = arith.truncf %363 : vector<8x32xf32> to vector<8x32xbf16>
    %cst_115 = arith.constant dense<0.000000e+00> : vector<8x128xf32>
    %371 = tpu.matmul %370, %229, %cst_115 {dimension_numbers = #tpu.dot_dimension_numbers<[1], [0], [0], [1], [0, 0, 1, 1], [], []>} : vector<8x32xbf16>, vector<32x128xbf16>, vector<8x128xf32> -> vector<8x128xf32>
    %372 = arith.addf %369, %371 : vector<8x128xf32>
    %373 = arith.mulf %372, %8 : vector<8x128xf32>
    %374 = math.tanh %373 : vector<8x128xf32>
    %375 = arith.mulf %374, %8 : vector<8x128xf32>
    %376 = arith.addf %375, %11 : vector<8x128xf32>
    %377 = vector.extract_strided_slice %376 {offsets = [0, 0], sizes = [8, 32], strides = [1, 1]} : vector<8x128xf32> to vector<8x32xf32>
    %378 = vector.extract_strided_slice %376 {offsets = [0, 32], sizes = [8, 32], strides = [1, 1]} : vector<8x128xf32> to vector<8x32xf32>
    %379 = vector.extract_strided_slice %376 {offsets = [0, 64], sizes = [8, 32], strides = [1, 1]} : vector<8x128xf32> to vector<8x32xf32>
    %380 = vector.extract_strided_slice %376 {offsets = [0, 96], sizes = [8, 32], strides = [1, 1]} : vector<8x128xf32> to vector<8x32xf32>
    %381 = arith.mulf %378, %361 : vector<8x32xf32>
    %382 = arith.mulf %377, %379 : vector<8x32xf32>
    %383 = arith.addf %381, %382 : vector<8x32xf32>
    %384 = math.tanh %383 : vector<8x32xf32>
    %385 = arith.mulf %380, %384 : vector<8x32xf32>
    %386 = arith.index_cast %367 : i32 to index
    %c0_116 = arith.constant 0 : index
    %387 = vector.load %arg12[%386, %c0_116] : memref<64x32xf32, #tpu.memory_space<vmem>>, vector<8x32xf32>
    tpu.vector_store %arg12[%386, %c0_116], %385 {strides = array<i32>} : memref<64x32xf32, #tpu.memory_space<vmem>>, vector<8x32xf32>,
    %c7_i32_117 = arith.constant 7 : i32
    %c8_i32_118 = arith.constant 8 : i32
    %388 = arith.muli %c7_i32_117, %c8_i32_118 : i32
    %389 = tpu.assume_multiple %388, 8 : i32
    %390 = arith.index_cast %389 : i32 to index
    %c0_119 = arith.constant 0 : index
    %391 = vector.load %arg13[%390, %c0_119] : memref<64x128xf32, #tpu.memory_space<vmem>>, vector<8x128xf32>
    %392 = arith.truncf %385 : vector<8x32xf32> to vector<8x32xbf16>
    %cst_120 = arith.constant dense<0.000000e+00> : vector<8x128xf32>
    %393 = tpu.matmul %392, %229, %cst_120 {dimension_numbers = #tpu.dot_dimension_numbers<[1], [0], [0], [1], [0, 0, 1, 1], [], []>} : vector<8x32xbf16>, vector<32x128xbf16>, vector<8x128xf32> -> vector<8x128xf32>
    %394 = arith.addf %391, %393 : vector<8x128xf32>
    %395 = arith.mulf %394, %8 : vector<8x128xf32>
    %396 = math.tanh %395 : vector<8x128xf32>
    %397 = arith.mulf %396, %8 : vector<8x128xf32>
    %398 = arith.addf %397, %11 : vector<8x128xf32>
    %399 = vector.extract_strided_slice %398 {offsets = [0, 0], sizes = [8, 32], strides = [1, 1]} : vector<8x128xf32> to vector<8x32xf32>
    %400 = vector.extract_strided_slice %398 {offsets = [0, 32], sizes = [8, 32], strides = [1, 1]} : vector<8x128xf32> to vector<8x32xf32>
    %401 = vector.extract_strided_slice %398 {offsets = [0, 64], sizes = [8, 32], strides = [1, 1]} : vector<8x128xf32> to vector<8x32xf32>
    %402 = vector.extract_strided_slice %398 {offsets = [0, 96], sizes = [8, 32], strides = [1, 1]} : vector<8x128xf32> to vector<8x32xf32>
    %403 = arith.mulf %400, %383 : vector<8x32xf32>
    %404 = arith.mulf %399, %401 : vector<8x32xf32>
    %405 = arith.addf %403, %404 : vector<8x32xf32>
    %406 = math.tanh %405 : vector<8x32xf32>
    %407 = arith.mulf %402, %406 : vector<8x32xf32>
    %408 = arith.index_cast %389 : i32 to index
    %c0_121 = arith.constant 0 : index
    %409 = vector.load %arg12[%408, %c0_121] : memref<64x32xf32, #tpu.memory_space<vmem>>, vector<8x32xf32>
    tpu.vector_store %arg12[%408, %c0_121], %407 {strides = array<i32>} : memref<64x32xf32, #tpu.memory_space<vmem>>, vector<8x32xf32>,
    %c8_i32_122 = arith.constant 8 : i32
    %c1_123 = arith.constant 1 : index
    %c0_124 = arith.constant 0 : index
    %c0_125 = arith.constant 0 : index
    %410 = vector.load %arg10[%c1_123, %c0_124, %c0_125] : memref<2x8x32xf32, #tpu.memory_space<vmem>>, vector<1x8x32xf32>
    %411 = vector.shape_cast %410 : vector<1x8x32xf32> to vector<8x32xf32>
    %412 = vector.shape_cast %407 : vector<8x32xf32> to vector<1x8x32xf32>
    tpu.vector_store %arg10[%c1_123, %c0_124, %c0_125], %412 {strides = array<i32>} : memref<2x8x32xf32, #tpu.memory_space<vmem>>, vector<1x8x32xf32>,
    %c1_126 = arith.constant 1 : index
    %c0_127 = arith.constant 0 : index
    %c0_128 = arith.constant 0 : index
    %413 = vector.load %arg11[%c1_126, %c0_127, %c0_128] : memref<2x8x32xf32, #tpu.memory_space<vmem>>, vector<1x8x32xf32>
    %414 = vector.shape_cast %413 : vector<1x8x32xf32> to vector<8x32xf32>
    %415 = vector.shape_cast %405 : vector<8x32xf32> to vector<1x8x32xf32>
    tpu.vector_store %arg11[%c1_126, %c0_127, %c0_128], %415 {strides = array<i32>} : memref<2x8x32xf32, #tpu.memory_space<vmem>>, vector<1x8x32xf32>,
    %c0_129 = arith.constant 0 : index
    %c0_130 = arith.constant 0 : index
    %416 = vector.load %arg12[%c0_129, %c0_130] : memref<64x32xf32, #tpu.memory_space<vmem>>, vector<64x32xf32>
    %417 = arith.truncf %416 : vector<64x32xf32> to vector<64x32xbf16>
    %c0_131 = arith.constant 0 : index
    %c0_132 = arith.constant 0 : index
    %418 = vector.load %arg7[%c0_131, %c0_132] : memref<32x128xbf16, #tpu.memory_space<vmem>>, vector<32x128xbf16>
    %cst_133 = arith.constant dense<0.000000e+00> : vector<64x128xf32>
    %419 = tpu.matmul %417, %418, %cst_133 {dimension_numbers = #tpu.dot_dimension_numbers<[1], [0], [0], [1], [0, 0, 1, 1], [], []>} : vector<64x32xbf16>, vector<32x128xbf16>, vector<64x128xf32> -> vector<64x128xf32>
    %c0_134 = arith.constant 0 : index
    %c0_135 = arith.constant 0 : index
    %420 = vector.load %arg8[%c0_134, %c0_135] : memref<1x128xf32, #tpu.memory_space<vmem>>, vector<1x128xf32>
    %421 = vector.broadcast %420 : vector<1x128xf32> to vector<64x128xf32>
    %422 = arith.addf %419, %421 : vector<64x128xf32>
    %c0_136 = arith.constant 0 : index
    %c0_137 = arith.constant 0 : index
    %423 = vector.load %arg9[%c0_136, %c0_137] : memref<64x128xf32, #tpu.memory_space<vmem>>, vector<64x128xf32>
    tpu.vector_store %arg9[%c0_136, %c0_137], %422 {strides = array<i32>} : memref<64x128xf32, #tpu.memory_space<vmem>>, vector<64x128xf32>,
    return
  }
}

</mosaic_0001>

<llo_original>
// kernel: lstm_lm_forward.1
$region0: #{lstm_lm_forward.1}
  #allocation0 [shape = 'u32[]', space=smem, size = 0x4, offset = 0x4, fixed_abs, tag = 'smem constant byte address 0x4 - core index']
  #allocation1 [shape = 'u32[144,128]{1,0:T(1,128)}', space=vmem, size = 0x12000, scoped, tag = 'internal scratch']
  #allocation2 [shape = 'f32[64,32]{1,0:T(8,128)}', space=vmem, size = 0x8000, scoped, tag = 'scratch operand']
  #allocation3 [shape = 'f32[64,128]{1,0:T(8,128)}', space=vmem, size = 0x8000, scoped, tag = 'scratch operand']
  %s0 = inlined_call_operand.vmem [shape: s32[64,1], index: 0, kind: input, shape index: {}]
  %s1 = inlined_call_operand.vmem [shape: bf16[128,32], index: 1, kind: input, shape index: {}]
  %s2 = inlined_call_operand.vmem [shape: bf16[2,32,128], index: 2, kind: input, shape index: {}]
  %s3 = inlined_call_operand.vmem [shape: bf16[2,32,128], index: 3, kind: input, shape index: {}]
  %s4 = inlined_call_operand.vmem [shape: f32[2,1,128], index: 4, kind: input, shape index: {}]
  %s5 = inlined_call_operand.vmem [shape: f32[2,8,32], index: 5, kind: input, shape index: {}]
  %s6 = inlined_call_operand.vmem [shape: f32[2,8,32], index: 6, kind: input, shape index: {}]
  %s7 = inlined_call_operand.vmem [shape: bf16[32,128], index: 7, kind: input, shape index: {}]
  %s8 = inlined_call_operand.vmem [shape: f32[1,128], index: 8, kind: input, shape index: {}]
  %s9 = inlined_call_operand.vmem [shape: f32[64,128], index: 9, kind: output, shape index: {0}]
  %s10 = inlined_call_operand.vmem [shape: f32[2,8,32], index: 10, kind: output, shape index: {1}]
  %s11 = inlined_call_operand.vmem [shape: f32[2,8,32], index: 11, kind: output, shape index: {2}]
  %12 = xla_tuple %s9, %s10, %s11
  %s13 = sld [smem:[#allocation0]]
  $region62: #{lstm_lm_forward.1} parent=0
    _
  %s15 = ssub.s32 1, %s13
  %s16 = scalar_select 0, %s15, %s13
  // Predicated region
  $region2: #{lstm_lm_forward.1} parent=0 // pred_check
    _
  $region3: #{lstm_lm_forward.1} parent=0 // pred_check_branch
    %18 = sbr.rel (0) target = $region5
  $region4: #{lstm_lm_forward.1} parent=0 // pred_region
    _
  $region5: #{lstm_lm_forward.1} parent=0 // pred_fallthru
    _
  // Predicated region
  $region6: #{lstm_lm_forward.1} parent=0 // pred_check
    _
  $region7: #{lstm_lm_forward.1} parent=0 // pred_check_branch
    %20 = sbr.rel (0) target = $region9
  $region8: #{lstm_lm_forward.1} parent=0 // pred_region
    _
  $region9: #{lstm_lm_forward.1} parent=0 // pred_fallthru
    _
  // Predicated region
  $region10: #{lstm_lm_forward.1} parent=0 // pred_check
    _
  $region11: #{lstm_lm_forward.1} parent=0 // pred_check_branch
    %22 = sbr.rel (0) target = $region13
  $region12: #{lstm_lm_forward.1} parent=0 // pred_region
    _
  $region13: #{lstm_lm_forward.1} parent=0 // pred_fallthru
    _
  // Predicated region
  $region14: #{lstm_lm_forward.1} parent=0 // pred_check
    _
  $region15: #{lstm_lm_forward.1} parent=0 // pred_check_branch
    %24 = sbr.rel (0) target = $region17
  $region16: #{lstm_lm_forward.1} parent=0 // pred_region
    _
  $region17: #{lstm_lm_forward.1} parent=0 // pred_fallthru
    _
  // Predicated region
  $region18: #{lstm_lm_forward.1} parent=0 // pred_check
    _
  $region19: #{lstm_lm_forward.1} parent=0 // pred_check_branch
    %26 = sbr.rel (0) target = $region21
  $region20: #{lstm_lm_forward.1} parent=0 // pred_region
    _
  $region21: #{lstm_lm_forward.1} parent=0 // pred_fallthru
    _
  // Predicated region
  $region22: #{lstm_lm_forward.1} parent=0 // pred_check
    _
  $region23: #{lstm_lm_forward.1} parent=0 // pred_check_branch
    %28 = sbr.rel (0) target = $region25
  $region24: #{lstm_lm_forward.1} parent=0 // pred_region
    _
  $region25: #{lstm_lm_forward.1} parent=0 // pred_fallthru
    _
  // Predicated region
  $region26: #{lstm_lm_forward.1} parent=0 // pred_check
    _
  $region27: #{lstm_lm_forward.1} parent=0 // pred_check_branch
    %30 = sbr.rel (0) target = $region29
  $region28: #{lstm_lm_forward.1} parent=0 // pred_region
    _
  $region29: #{lstm_lm_forward.1} parent=0 // pred_fallthru
    _
  // Predicated region
  $region30: #{lstm_lm_forward.1} parent=0 // pred_check
    _
  $region31: #{lstm_lm_forward.1} parent=0 // pred_check_branch
    %32 = sbr.rel (0) target = $region33
  $region32: #{lstm_lm_forward.1} parent=0 // pred_region
    _
  $region33: #{lstm_lm_forward.1} parent=0 // pred_fallthru
    _
  // Predicated region
  $region34: #{lstm_lm_forward.1} parent=0 // pred_check
    _
  $region35: #{lstm_lm_forward.1} parent=0 // pred_check_branch
    %34 = sbr.rel (0) target = $region37
  $region36: #{lstm_lm_forward.1} parent=0 // pred_region
    _
  $region37: #{lstm_lm_forward.1} parent=0 // pred_fallthru
    _
  %v36 = vlaneseq
  %v37 = vand.u32 %v36, 127
  %vm38 = vcmp.ge.s32.totalorder %v37, 64
  %vm39 = vcmp.lt.s32.totalorder %v37, 96
  %vm40 = vmand %vm38, %vm39
  %v41 = vsel %vm40, 1.0, 0.5
  %v42 = vsel %vm40, 0.0, 0.5
  %v43 = vld [vmem:[%s0] sm:$0xff]
  %v44 = vld [vmem:[%s0 + $0x8] sm:$0xff]
  %v45 = vld [vmem:[%s0 + $0x10] sm:$0xff]
  %v46 = vld [vmem:[%s0 + $0x18] sm:$0xff]
  %v47 = vld [vmem:[%s0 + $0x20] sm:$0xff]
  %v48 = vld [vmem:[%s0 + $0x28] sm:$0xff]
  %v49 = vld [vmem:[%s0 + $0x30] sm:$0xff]
  %v50 = vld [vmem:[%s0 + $0x38] sm:$0xff]
  %51 = vset.pattern.permute.xlu0 0
  %52 = vperm.xlu0 %51, %v43
  %v53 = vpop.permute.xlu0 %52
  %54 = vset.pattern.permute.xlu0 0
  %55 = vperm.xlu0 %54, %v44
  %v56 = vpop.permute.xlu0 %55
  %57 = vset.pattern.permute.xlu0 0
  %58 = vperm.xlu0 %57, %v45
  %v59 = vpop.permute.xlu0 %58
  %60 = vset.pattern.permute.xlu0 0
  %61 = vperm.xlu0 %60, %v46
  %v62 = vpop.permute.xlu0 %61
  %63 = vset.pattern.permute.xlu0 0
  %64 = vperm.xlu0 %63, %v47
  %v65 = vpop.permute.xlu0 %64
  %66 = vset.pattern.permute.xlu0 0
  %67 = vperm.xlu0 %66, %v48
  %v68 = vpop.permute.xlu0 %67
  %69 = vset.pattern.permute.xlu0 0
  %70 = vperm.xlu0 %69, %v49
  %v71 = vpop.permute.xlu0 %70
  %72 = vset.pattern.permute.xlu0 0
  %73 = vperm.xlu0 %72, %v50
  %v74 = vpop.permute.xlu0 %73
  %vm75 = vcmp.eq.s32.totalorder %v37, %v53
  %vm76 = vcmp.eq.s32.totalorder %v37, %v56
  %vm77 = vcmp.eq.s32.totalorder %v37, %v59
  %vm78 = vcmp.eq.s32.totalorder %v37, %v62
  %vm79 = vcmp.eq.s32.totalorder %v37, %v65
  %vm80 = vcmp.eq.s32.totalorder %v37, %v68
  %vm81 = vcmp.eq.s32.totalorder %v37, %v71
  %vm82 = vcmp.eq.s32.totalorder %v37, %v74
  %v83 = vsel %vm75, 1, 0
  %v84 = vsel %vm76, 1, 0
  %v85 = vsel %vm77, 1, 0
  %v86 = vsel %vm78, 1, 0
  %v87 = vsel %vm79, 1, 0
  %v88 = vsel %vm80, 1, 0
  %v89 = vsel %vm81, 1, 0
  %v90 = vsel %vm82, 1, 0
  %v91 = vcvt.s32.f32 %v83
  %v92 = vcvt.s32.f32 %v84
  %v93 = vcvt.s32.f32 %v85
  %v94 = vcvt.s32.f32 %v86
  %v95 = vcvt.s32.f32 %v87
  %v96 = vcvt.s32.f32 %v88
  %v97 = vcvt.s32.f32 %v89
  %v98 = vcvt.s32.f32 %v90
  %v99 = vpack.c.bf16 %v92, %v91
  %v100 = vpack.c.bf16 %v94, %v93
  %v101 = vpack.c.bf16 %v96, %v95
  %v102 = vpack.c.bf16 %v98, %v97
  %v103 = vld [vmem:[%s1] sm:$0xf]
  %v104 = vld [vmem:[%s1 + $0x4] sm:$0xf]
  %v105 = vld [vmem:[%s1 + $0x8] sm:$0xf]
  %v106 = vld [vmem:[%s1 + $0xc] sm:$0xf]
  %v107 = vld [vmem:[%s1 + $0x10] sm:$0xf]
  %v108 = vld [vmem:[%s1 + $0x14] sm:$0xf]
  %v109 = vld [vmem:[%s1 + $0x18] sm:$0xf]
  %v110 = vld [vmem:[%s1 + $0x1c] sm:$0xf]
  %v111 = vld [vmem:[%s1 + $0x20] sm:$0xf]
  %v112 = vld [vmem:[%s1 + $0x24] sm:$0xf]
  %v113 = vld [vmem:[%s1 + $0x28] sm:$0xf]
  %v114 = vld [vmem:[%s1 + $0x2c] sm:$0xf]
  %v115 = vld [vmem:[%s1 + $0x30] sm:$0xf]
  %v116 = vld [vmem:[%s1 + $0x34] sm:$0xf]
  %v117 = vld [vmem:[%s1 + $0x38] sm:$0xf]
  %v118 = vld [vmem:[%s1 + $0x3c] sm:$0xf]
  %v135 = vunpack.c.l.b16 %v103
  %v136 = vunpack.c.l.b16 %v104
  %v137 = vunpack.c.l.b16 %v105
  %v138 = vunpack.c.l.b16 %v106
  %v139 = vunpack.c.l.b16 %v107
  %v140 = vunpack.c.l.b16 %v108
  %v141 = vunpack.c.l.b16 %v109
  %v142 = vunpack.c.l.b16 %v110
  %v143 = vunpack.c.l.b16 %v111
  %v144 = vunpack.c.l.b16 %v112
  %v145 = vunpack.c.l.b16 %v113
  %v146 = vunpack.c.l.b16 %v114
  %v147 = vunpack.c.l.b16 %v115
  %v148 = vunpack.c.l.b16 %v116
  %v149 = vunpack.c.l.b16 %v117
  %v150 = vunpack.c.l.b16 %v118
  %v151 = vpack.c.b16 %v136, %v135
  %v152 = vpack.c.b16 %v138, %v137
  %v153 = vpack.c.b16 %v140, %v139
  %v154 = vpack.c.b16 %v142, %v141
  %v155 = vpack.c.b16 %v144, %v143
  %v156 = vpack.c.b16 %v146, %v145
  %v157 = vpack.c.b16 %v148, %v147
  %v158 = vpack.c.b16 %v150, %v149
  %167 = vmatprep.subr.bf16.mxu0 0
  %168 = vmatpush1.bf16.msra.mxu0 %v151
  %169 = vmatprep.subr.bf16.mxu0 0
  %170 = vmatpush1.bf16.msra.mxu0 %v152
  %171 = vmatprep.subr.bf16.mxu0 0
  %172 = vmatpush1.bf16.msra.mxu0 %v153
  %173 = vmatprep.subr.bf16.mxu0 0
  %174 = vmatpush1.bf16.msra.mxu0 %v154
  %175 = vmatprep.subr.bf16.mxu0 0
  %176 = vmatpush1.bf16.msra.mxu0 %v155
  %177 = vmatprep.subr.bf16.mxu0 0
  %178 = vmatpush1.bf16.msra.mxu0 %v156
  %179 = vmatprep.subr.bf16.mxu0 0
  %180 = vmatpush1.bf16.msra.mxu0 %v157
  %181 = vmatprep.subr.bf16.mxu0 0
  %182 = vmatpush1.bf16.msra.mxu0 %v158
  %183 = vmatprep.subr.bf16.mxu0 0
  %184 = vmatpush1.bf16.msra.mxu0 0
  %185 = vmatprep.subr.bf16.mxu0 0
  %186 = vmatpush1.bf16.msra.mxu0 0
  %187 = vmatprep.subr.bf16.mxu0 0
  %188 = vmatpush1.bf16.msra.mxu0 0
  %189 = vmatprep.subr.bf16.mxu0 0
  %190 = vmatpush1.bf16.msra.mxu0 0
  %191 = vmatprep.subr.bf16.mxu0 0
  %192 = vmatpush1.bf16.msra.mxu0 0
  %193 = vmatprep.subr.bf16.mxu0 0
  %194 = vmatpush1.bf16.msra.mxu0 0
  %195 = vmatprep.subr.bf16.mxu0 0
  %196 = vmatpush1.bf16.msra.mxu0 0
  %197 = vmatprep.subr.bf16.mxu0 0
  %198 = vmatpush1.bf16.msra.mxu0 0
  %199 = vmatprep.mubr.bf16.mxu0 0
  %200 = vmatmul.mubr.bf16.gmra.mrb[0].mxu0 %v99
  %v201 = vpop.f32.mrb[0].mxu0
  %v202 = vadd.f32 0.0, %v201
  %v203 = vpop.f32.mrb[0].mxu0
  %v204 = vpop.f32.mrb[0].mxu0
  %v205 = vadd.f32 0.0, %v204
  %v206 = vpop.f32.mrb[0].mxu0
  %207 = vmatprep.mubr.bf16.mxu0 0
  %208 = vmatmul.mubr.bf16.gmra.mrb[0].mxu0 %v100
  %v209 = vpop.f32.mrb[0].mxu0
  %v210 = vadd.f32 0.0, %v209
  %v211 = vpop.f32.mrb[0].mxu0
  %v212 = vpop.f32.mrb[0].mxu0
  %v213 = vadd.f32 0.0, %v212
  %v214 = vpop.f32.mrb[0].mxu0
  %215 = vmatprep.mubr.bf16.mxu0 0
  %216 = vmatmul.mubr.bf16.gmra.mrb[0].mxu0 %v101
  %v217 = vpop.f32.mrb[0].mxu0
  %v218 = vadd.f32 0.0, %v217
  %v219 = vpop.f32.mrb[0].mxu0
  %v220 = vpop.f32.mrb[0].mxu0
  %v221 = vadd.f32 0.0, %v220
  %v222 = vpop.f32.mrb[0].mxu0
  %223 = vmatprep.mubr.bf16.mxu0 0
  %224 = vmatmul.mubr.bf16.gmra.mrb[0].mxu0 %v102
  %v225 = vpop.f32.mrb[0].mxu0
  %v226 = vadd.f32 0.0, %v225
  %v227 = vpop.f32.mrb[0].mxu0
  %v228 = vpop.f32.mrb[0].mxu0
  %v229 = vadd.f32 0.0, %v228
  %v230 = vpop.f32.mrb[0].mxu0
  %231 = vdwg.mxu0
  %v232 = vpack.c.bf16 %v205, %v202
  %v233 = vpack.c.bf16 %v213, %v210
  %v234 = vpack.c.bf16 %v221, %v218
  %v235 = vpack.c.bf16 %v229, %v226
  %v236 = vld [vmem:[%s2] sm:$0xf]
  %v237 = vld [vmem:[%s2 + $0x4] sm:$0xf]
  %v238 = vld [vmem:[%s2 + $0x8] sm:$0xf]
  %v239 = vld [vmem:[%s2 + $0xc] sm:$0xf]
  %v240 = vld [vmem:[%s4] sm:$0x1]
  %v242 = vlaneseq
  %v243 = vshrl.u32 %v242, 7
  %v244 = vsub.s32 0, %v243
  %v245 = vrot.slane %v240, %v244
  %v251 = vunpack.c.l.b16 %v236
  %v252 = vunpack.c.l.b16 %v237
  %v253 = vunpack.c.l.b16 %v238
  %v254 = vunpack.c.l.b16 %v239
  %v255 = vpack.c.b16 %v252, %v251
  %v256 = vpack.c.b16 %v254, %v253
  %vm259 = vcmask 261120
  %v261 = vsel %vm259, %v232, 0
  %v264 = vsel %vm259, %v233, 0
  %v267 = vsel %vm259, %v234, 0
  %v270 = vsel %vm259, %v235, 0
  %272 = vmatprep.subr.bf16.mxu0 0
  %273 = vmatpush1.bf16.msra.mxu0 %v255
  %274 = vmatprep.subr.bf16.mxu0 0
  %275 = vmatpush1.bf16.msra.mxu0 %v256
  %276 = vmatprep.subr.bf16.mxu0 0
  %277 = vmatpush1.bf16.msra.mxu0 0
  %278 = vmatprep.subr.bf16.mxu0 0
  %279 = vmatpush1.bf16.msra.mxu0 0
  %280 = vmatprep.subr.bf16.mxu0 0
  %281 = vmatpush1.bf16.msra.mxu0 0
  %282 = vmatprep.subr.bf16.mxu0 0
  %283 = vmatpush1.bf16.msra.mxu0 0
  %284 = vmatprep.subr.bf16.mxu0 0
  %285 = vmatpush1.bf16.msra.mxu0 0
  %286 = vmatprep.subr.bf16.mxu0 0
  %287 = vmatpush1.bf16.msra.mxu0 0
  %288 = vmatprep.subr.bf16.mxu0 0
  %289 = vmatpush1.bf16.msra.mxu0 0
  %290 = vmatprep.subr.bf16.mxu0 0
  %291 = vmatpush1.bf16.msra.mxu0 0
  %292 = vmatprep.subr.bf16.mxu0 0
  %293 = vmatpush1.bf16.msra.mxu0 0
  %294 = vmatprep.subr.bf16.mxu0 0
  %295 = vmatpush1.bf16.msra.mxu0 0
  %296 = vmatprep.subr.bf16.mxu0 0
  %297 = vmatpush1.bf16.msra.mxu0 0
  %298 = vmatprep.subr.bf16.mxu0 0
  %299 = vmatpush1.bf16.msra.mxu0 0
  %300 = vmatprep.subr.bf16.mxu0 0
  %301 = vmatpush1.bf16.msra.mxu0 0
  %302 = vmatprep.subr.bf16.mxu0 0
  %303 = vmatpush1.bf16.msra.mxu0 0
  %304 = vmatprep.mubr.bf16.mxu0 0
  %305 = vmatmul.mubr.bf16.gmra.mrb[0].mxu0 %v261
  %v306 = vpop.f32.mrb[0].mxu0
  %v307 = vadd.f32 %v245, %v306
  %v308 = vpop.f32.mrb[0].mxu0
  %v309 = vpop.f32.mrb[0].mxu0
  %v310 = vadd.f32 %v245, %v309
  %v311 = vpop.f32.mrb[0].mxu0
  %312 = vmatprep.mubr.bf16.mxu0 0
  %313 = vmatmul.mubr.bf16.gmra.mrb[0].mxu0 %v264
  %v314 = vpop.f32.mrb[0].mxu0
  %v315 = vadd.f32 %v245, %v314
  %v316 = vpop.f32.mrb[0].mxu0
  %v317 = vpop.f32.mrb[0].mxu0
  %v318 = vadd.f32 %v245, %v317
  %v319 = vpop.f32.mrb[0].mxu0
  %320 = vmatprep.mubr.bf16.mxu0 0
  %321 = vmatmul.mubr.bf16.gmra.mrb[0].mxu0 %v267
  %v322 = vpop.f32.mrb[0].mxu0
  %v323 = vadd.f32 %v245, %v322
  %v324 = vpop.f32.mrb[0].mxu0
  %v325 = vpop.f32.mrb[0].mxu0
  %v326 = vadd.f32 %v245, %v325
  %v327 = vpop.f32.mrb[0].mxu0
  %328 = vmatprep.mubr.bf16.mxu0 0
  %329 = vmatmul.mubr.bf16.gmra.mrb[0].mxu0 %v270
  %v330 = vpop.f32.mrb[0].mxu0
  %v331 = vadd.f32 %v245, %v330
  %v332 = vpop.f32.mrb[0].mxu0
  %v333 = vpop.f32.mrb[0].mxu0
  %v334 = vadd.f32 %v245, %v333
  %v335 = vpop.f32.mrb[0].mxu0
  %336 = vdwg.mxu0
  %337 = vst [vmem:[#allocation3] sm:$0xff] %v307
  %338 = vst [vmem:[#allocation3 + $0x8] sm:$0xff] %v310
  %339 = vst [vmem:[#allocation3 + $0x10] sm:$0xff] %v315
  %340 = vst [vmem:[#allocation3 + $0x18] sm:$0xff] %v318
  %341 = vst [vmem:[#allocation3 + $0x20] sm:$0xff] %v323
  %342 = vst [vmem:[#allocation3 + $0x28] sm:$0xff] %v326
  %343 = vst [vmem:[#allocation3 + $0x30] sm:$0xff] %v331
  %344 = vst [vmem:[#allocation3 + $0x38] sm:$0xff] %v334
  %v345 = vld [vmem:[%s3] sm:$0xf]
  %v346 = vld [vmem:[%s3 + $0x4] sm:$0xf]
  %v347 = vld [vmem:[%s3 + $0x8] sm:$0xf]
  %v348 = vld [vmem:[%s3 + $0xc] sm:$0xf]
  %v349 = vld [vmem:[%s5] sm:$0xff]
  %v350 = vld [vmem:[%s6] sm:$0xff]
  %v351 = vld [vmem:[#allocation3] sm:$0xff]
  %v352 = vpack.c.bf16 %v349, %v349
  %v357 = vunpack.c.l.b16 %v345
  %v358 = vunpack.c.l.b16 %v346
  %v359 = vunpack.c.l.b16 %v347
  %v360 = vunpack.c.l.b16 %v348
  %v361 = vpack.c.b16 %v358, %v357
  %v362 = vpack.c.b16 %v360, %v359
  %v366 = vsel %vm259, %v352, 0
  %368 = vmatprep.subr.bf16.mxu0 0
  %369 = vmatpush1.bf16.msra.mxu0 %v361
  %370 = vmatprep.subr.bf16.mxu0 0
  %371 = vmatpush1.bf16.msra.mxu0 %v362
  %372 = vmatprep.subr.bf16.mxu0 0
  %373 = vmatpush1.bf16.msra.mxu0 0
  %374 = vmatprep.subr.bf16.mxu0 0
  %375 = vmatpush1.bf16.msra.mxu0 0
  %376 = vmatprep.subr.bf16.mxu0 0
  %377 = vmatpush1.bf16.msra.mxu0 0
  %378 = vmatprep.subr.bf16.mxu0 0
  %379 = vmatpush1.bf16.msra.mxu0 0
  %380 = vmatprep.subr.bf16.mxu0 0
  %381 = vmatpush1.bf16.msra.mxu0 0
  %382 = vmatprep.subr.bf16.mxu0 0
  %383 = vmatpush1.bf16.msra.mxu0 0
  %384 = vmatprep.subr.bf16.mxu0 0
  %385 = vmatpush1.bf16.msra.mxu0 0
  %386 = vmatprep.subr.bf16.mxu0 0
  %387 = vmatpush1.bf16.msra.mxu0 0
  %388 = vmatprep.subr.bf16.mxu0 0
  %389 = vmatpush1.bf16.msra.mxu0 0
  %390 = vmatprep.subr.bf16.mxu0 0
  %391 = vmatpush1.bf16.msra.mxu0 0
  %392 = vmatprep.subr.bf16.mxu0 0
  %393 = vmatpush1.bf16.msra.mxu0 0
  %394 = vmatprep.subr.bf16.mxu0 0
  %395 = vmatpush1.bf16.msra.mxu0 0
  %396 = vmatprep.subr.bf16.mxu0 0
  %397 = vmatpush1.bf16.msra.mxu0 0
  %398 = vmatprep.subr.bf16.mxu0 0
  %399 = vmatpush1.bf16.msra.mxu0 0
  %400 = vmatprep.mubr.bf16.mxu0 0
  %401 = vmatmul.mubr.bf16.gmra.mrb[0].mxu0 %v366
  %v402 = vpop.f32.mrb[0].mxu0
  %v403 = vadd.f32 0.0, %v402
  %v404 = vpop.f32.mrb[0].mxu0
  %v405 = vpop.f32.mrb[0].mxu0
  %v406 = vpop.f32.mrb[0].mxu0
  %407 = vdwg.mxu0
  %v408 = vadd.f32 %v351, %v403
  %v409 = vmul.f32 %v408, %v41
  %v410 = vtanh.pop %v409
  %v411 = vmul.f32 %v410, %v41
  %v412 = vadd.f32 %v411, %v42
  %414 = vrot.lane.b32.xlu0 %v350, 32
  %v415 = vpop.permute.xlu0 %414
  %v417 = vmul.f32 %v412, %v415
  %419 = vrot.lane.b32.xlu0 %v412, 64
  %v420 = vpop.permute.xlu0 %419
  %v422 = vmul.f32 %v412, %v420
  %424 = vrot.lane.b32.xlu0 %v422, 32
  %v425 = vpop.permute.xlu0 %424
  %v427 = vadd.f32 %v417, %v425
  %v428 = vtanh.pop %v427
  %430 = vrot.lane.b32.xlu0 %v428, 64
  %v431 = vpop.permute.xlu0 %430
  %v433 = vmul.f32 %v412, %v431
  %435 = vrot.lane.b32.xlu0 %v433, 32
  %v436 = vpop.permute.xlu0 %435
  %438 = vst.msk [vmem:[#allocation2] sm:$0xff] %vm259, %v436
  %s439 = scalar_lea.vmem [#allocation3], 8
  %v440 = vld [vmem:[%s439] sm:$0xff]
  %v441 = vpack.c.bf16 %v433, %v433
  %443 = vrot.lane.b32.xlu0 %v441, 32
  %v444 = vpop.permute.xlu0 %443
  %v446 = vsel %vm259, %v444, 0
  %448 = vmatprep.subr.bf16.mxu0 0
  %449 = vmatpush1.bf16.msra.mxu0 %v361
  %450 = vmatprep.subr.bf16.mxu0 0
  %451 = vmatpush1.bf16.msra.mxu0 %v362
  %452 = vmatprep.subr.bf16.mxu0 0
  %453 = vmatpush1.bf16.msra.mxu0 0
  %454 = vmatprep.subr.bf16.mxu0 0
  %455 = vmatpush1.bf16.msra.mxu0 0
  %456 = vmatprep.subr.bf16.mxu0 0
  %457 = vmatpush1.bf16.msra.mxu0 0
  %458 = vmatprep.subr.bf16.mxu0 0
  %459 = vmatpush1.bf16.msra.mxu0 0
  %460 = vmatprep.subr.bf16.mxu0 0
  %461 = vmatpush1.bf16.msra.mxu0 0
  %462 = vmatprep.subr.bf16.mxu0 0
  %463 = vmatpush1.bf16.msra.mxu0 0
  %464 = vmatprep.subr.bf16.mxu0 0
  %465 = vmatpush1.bf16.msra.mxu0 0
  %466 = vmatprep.subr.bf16.mxu0 0
  %467 = vmatpush1.bf16.msra.mxu0 0
  %468 = vmatprep.subr.bf16.mxu0 0
  %469 = vmatpush1.bf16.msra.mxu0 0
  %470 = vmatprep.subr.bf16.mxu0 0
  %471 = vmatpush1.bf16.msra.mxu0 0
  %472 = vmatprep.subr.bf16.mxu0 0
  %473 = vmatpush1.bf16.msra.mxu0 0
  %474 = vmatprep.subr.bf16.mxu0 0
  %475 = vmatpush1.bf16.msra.mxu0 0
  %476 = vmatprep.subr.bf16.mxu0 0
  %477 = vmatpush1.bf16.msra.mxu0 0
  %478 = vmatprep.subr.bf16.mxu0 0
  %479 = vmatpush1.bf16.msra.mxu0 0
  %480 = vmatprep.mubr.bf16.mxu0 0
  %481 = vmatmul.mubr.bf16.gmra.mrb[0].mxu0 %v446
  %v482 = vpop.f32.mrb[0].mxu0
  %v483 = vadd.f32 0.0, %v482
  %v484 = vpop.f32.mrb[0].mxu0
  %v485 = vpop.f32.mrb[0].mxu0
  %v486 = vpop.f32.mrb[0].mxu0
  %487 = vdwg.mxu0
  %v488 = vadd.f32 %v440, %v483
  %v489 = vmul.f32 %v488, %v41
  %v490 = vtanh.pop %v489
  %v491 = vmul.f32 %v490, %v41
  %v492 = vadd.f32 %v491, %v42
  %v493 = vmul.f32 %v492, %v427
  %495 = vrot.lane.b32.xlu0 %v492, 64
  %v496 = vpop.permute.xlu0 %495
  %v498 = vmul.f32 %v492, %v496
  %500 = vrot.lane.b32.xlu0 %v498, 32
  %v501 = vpop.permute.xlu0 %500
  %v503 = vadd.f32 %v493, %v501
  %v504 = vtanh.pop %v503
  %506 = vrot.lane.b32.xlu0 %v504, 64
  %v507 = vpop.permute.xlu0 %506
  %v509 = vmul.f32 %v492, %v507
  %511 = vrot.lane.b32.xlu0 %v509, 32
  %v512 = vpop.permute.xlu0 %511
  %s514 = scalar_lea.vmem [#allocation2], 8
  %515 = vst.msk [vmem:[%s514] sm:$0xff] %vm259, %v512
  %s516 = scalar_lea.vmem [#allocation3], 16
  %v517 = vld [vmem:[%s516] sm:$0xff]
  %v518 = vpack.c.bf16 %v509, %v509
  %520 = vrot.lane.b32.xlu0 %v518, 32
  %v521 = vpop.permute.xlu0 %520
  %v523 = vsel %vm259, %v521, 0
  %525 = vmatprep.subr.bf16.mxu0 0
  %526 = vmatpush1.bf16.msra.mxu0 %v361
  %527 = vmatprep.subr.bf16.mxu0 0
  %528 = vmatpush1.bf16.msra.mxu0 %v362
  %529 = vmatprep.subr.bf16.mxu0 0
  %530 = vmatpush1.bf16.msra.mxu0 0
  %531 = vmatprep.subr.bf16.mxu0 0
  %532 = vmatpush1.bf16.msra.mxu0 0
  %533 = vmatprep.subr.bf16.mxu0 0
  %534 = vmatpush1.bf16.msra.mxu0 0
  %535 = vmatprep.subr.bf16.mxu0 0
  %536 = vmatpush1.bf16.msra.mxu0 0
  %537 = vmatprep.subr.bf16.mxu0 0
  %538 = vmatpush1.bf16.msra.mxu0 0
  %539 = vmatprep.subr.bf16.mxu0 0
  %540 = vmatpush1.bf16.msra.mxu0 0
  %541 = vmatprep.subr.bf16.mxu0 0
  %542 = vmatpush1.bf16.msra.mxu0 0
  %543 = vmatprep.subr.bf16.mxu0 0
  %544 = vmatpush1.bf16.msra.mxu0 0
  %545 = vmatprep.subr.bf16.mxu0 0
  %546 = vmatpush1.bf16.msra.mxu0 0
  %547 = vmatprep.subr.bf16.mxu0 0
  %548 = vmatpush1.bf16.msra.mxu0 0
  %549 = vmatprep.subr.bf16.mxu0 0
  %550 = vmatpush1.bf16.msra.mxu0 0
  %551 = vmatprep.subr.bf16.mxu0 0
  %552 = vmatpush1.bf16.msra.mxu0 0
  %553 = vmatprep.subr.bf16.mxu0 0
  %554 = vmatpush1.bf16.msra.mxu0 0
  %555 = vmatprep.subr.bf16.mxu0 0
  %556 = vmatpush1.bf16.msra.mxu0 0
  %557 = vmatprep.mubr.bf16.mxu0 0
  %558 = vmatmul.mubr.bf16.gmra.mrb[0].mxu0 %v523
  %v559 = vpop.f32.mrb[0].mxu0
  %v560 = vadd.f32 0.0, %v559
  %v561 = vpop.f32.mrb[0].mxu0
  %v562 = vpop.f32.mrb[0].mxu0
  %v563 = vpop.f32.mrb[0].mxu0
  %564 = vdwg.mxu0
  %v565 = vadd.f32 %v517, %v560
  %v566 = vmul.f32 %v565, %v41
  %v567 = vtanh.pop %v566
  %v568 = vmul.f32 %v567, %v41
  %v569 = vadd.f32 %v568, %v42
  %v570 = vmul.f32 %v569, %v503
  %572 = vrot.lane.b32.xlu0 %v569, 64
  %v573 = vpop.permute.xlu0 %572
  %v575 = vmul.f32 %v569, %v573
  %577 = vrot.lane.b32.xlu0 %v575, 32
  %v578 = vpop.permute.xlu0 %577
  %v580 = vadd.f32 %v570, %v578
  %v581 = vtanh.pop %v580
  %583 = vrot.lane.b32.xlu0 %v581, 64
  %v584 = vpop.permute.xlu0 %583
  %v586 = vmul.f32 %v569, %v584
  %588 = vrot.lane.b32.xlu0 %v586, 32
  %v589 = vpop.permute.xlu0 %588
  %s591 = scalar_lea.vmem [#allocation2], 16
  %592 = vst.msk [vmem:[%s591] sm:$0xff] %vm259, %v589
  %s593 = scalar_lea.vmem [#allocation3], 24
  %v594 = vld [vmem:[%s593] sm:$0xff]
  %v595 = vpack.c.bf16 %v586, %v586
  %597 = vrot.lane.b32.xlu0 %v595, 32
  %v598 = vpop.permute.xlu0 %597
  %v600 = vsel %vm259, %v598, 0
  %602 = vmatprep.subr.bf16.mxu0 0
  %603 = vmatpush1.bf16.msra.mxu0 %v361
  %604 = vmatprep.subr.bf16.mxu0 0
  %605 = vmatpush1.bf16.msra.mxu0 %v362
  %606 = vmatprep.subr.bf16.mxu0 0
  %607 = vmatpush1.bf16.msra.mxu0 0
  %608 = vmatprep.subr.bf16.mxu0 0
  %609 = vmatpush1.bf16.msra.mxu0 0
  %610 = vmatprep.subr.bf16.mxu0 0
  %611 = vmatpush1.bf16.msra.mxu0 0
  %612 = vmatprep.subr.bf16.mxu0 0
  %613 = vmatpush1.bf16.msra.mxu0 0
  %614 = vmatprep.subr.bf16.mxu0 0
  %615 = vmatpush1.bf16.msra.mxu0 0
  %616 = vmatprep.subr.bf16.mxu0 0
  %617 = vmatpush1.bf16.msra.mxu0 0
  %618 = vmatprep.subr.bf16.mxu0 0
  %619 = vmatpush1.bf16.msra.mxu0 0
  %620 = vmatprep.subr.bf16.mxu0 0
  %621 = vmatpush1.bf16.msra.mxu0 0
  %622 = vmatprep.subr.bf16.mxu0 0
  %623 = vmatpush1.bf16.msra.mxu0 0
  %624 = vmatprep.subr.bf16.mxu0 0
  %625 = vmatpush1.bf16.msra.mxu0 0
  %626 = vmatprep.subr.bf16.mxu0 0
  %627 = vmatpush1.bf16.msra.mxu0 0
  %628 = vmatprep.subr.bf16.mxu0 0
  %629 = vmatpush1.bf16.msra.mxu0 0
  %630 = vmatprep.subr.bf16.mxu0 0
  %631 = vmatpush1.bf16.msra.mxu0 0
  %632 = vmatprep.subr.bf16.mxu0 0
  %633 = vmatpush1.bf16.msra.mxu0 0
  %634 = vmatprep.mubr.bf16.mxu0 0
  %635 = vmatmul.mubr.bf16.gmra.mrb[0].mxu0 %v600
  %v636 = vpop.f32.mrb[0].mxu0
  %v637 = vadd.f32 0.0, %v636
  %v638 = vpop.f32.mrb[0].mxu0
  %v639 = vpop.f32.mrb[0].mxu0
  %v640 = vpop.f32.mrb[0].mxu0
  %641 = vdwg.mxu0
  %v642 = vadd.f32 %v594, %v637
  %v643 = vmul.f32 %v642, %v41
  %v644 = vtanh.pop %v643
  %v645 = vmul.f32 %v644, %v41
  %v646 = vadd.f32 %v645, %v42
  %v647 = vmul.f32 %v646, %v580
  %649 = vrot.lane.b32.xlu0 %v646, 64
  %v650 = vpop.permute.xlu0 %649
  %v652 = vmul.f32 %v646, %v650
  %654 = vrot.lane.b32.xlu0 %v652, 32
  %v655 = vpop.permute.xlu0 %654
  %v657 = vadd.f32 %v647, %v655
  %v658 = vtanh.pop %v657
  %660 = vrot.lane.b32.xlu0 %v658, 64
  %v661 = vpop.permute.xlu0 %660
  %v663 = vmul.f32 %v646, %v661
  %665 = vrot.lane.b32.xlu0 %v663, 32
  %v666 = vpop.permute.xlu0 %665
  %s668 = scalar_lea.vmem [#allocation2], 24
  %669 = vst.msk [vmem:[%s668] sm:$0xff] %vm259, %v666
  %s670 = scalar_lea.vmem [#allocation3], 32
  %v671 = vld [vmem:[%s670] sm:$0xff]
  %v672 = vpack.c.bf16 %v663, %v663
  %674 = vrot.lane.b32.xlu0 %v672, 32
  %v675 = vpop.permute.xlu0 %674
  %v677 = vsel %vm259, %v675, 0
  %679 = vmatprep.subr.bf16.mxu0 0
  %680 = vmatpush1.bf16.msra.mxu0 %v361
  %681 = vmatprep.subr.bf16.mxu0 0
  %682 = vmatpush1.bf16.msra.mxu0 %v362
  %683 = vmatprep.subr.bf16.mxu0 0
  %684 = vmatpush1.bf16.msra.mxu0 0
  %685 = vmatprep.subr.bf16.mxu0 0
  %686 = vmatpush1.bf16.msra.mxu0 0
  %687 = vmatprep.subr.bf16.mxu0 0
  %688 = vmatpush1.bf16.msra.mxu0 0
  %689 = vmatprep.subr.bf16.mxu0 0
  %690 = vmatpush1.bf16.msra.mxu0 0
  %691 = vmatprep.subr.bf16.mxu0 0
  %692 = vmatpush1.bf16.msra.mxu0 0
  %693 = vmatprep.subr.bf16.mxu0 0
  %694 = vmatpush1.bf16.msra.mxu0 0
  %695 = vmatprep.subr.bf16.mxu0 0
  %696 = vmatpush1.bf16.msra.mxu0 0
  %697 = vmatprep.subr.bf16.mxu0 0
  %698 = vmatpush1.bf16.msra.mxu0 0
  %699 = vmatprep.subr.bf16.mxu0 0
  %700 = vmatpush1.bf16.msra.mxu0 0
  %701 = vmatprep.subr.bf16.mxu0 0
  %702 = vmatpush1.bf16.msra.mxu0 0
  %703 = vmatprep.subr.bf16.mxu0 0
  %704 = vmatpush1.bf16.msra.mxu0 0
  %705 = vmatprep.subr.bf16.mxu0 0
  %706 = vmatpush1.bf16.msra.mxu0 0
  %707 = vmatprep.subr.bf16.mxu0 0
  %708 = vmatpush1.bf16.msra.mxu0 0
  %709 = vmatprep.subr.bf16.mxu0 0
  %710 = vmatpush1.bf16.msra.mxu0 0
  %711 = vmatprep.mubr.bf16.mxu0 0
  %712 = vmatmul.mubr.bf16.gmra.mrb[0].mxu0 %v677
  %v713 = vpop.f32.mrb[0].mxu0
  %v714 = vadd.f32 0.0, %v713
  %v715 = vpop.f32.mrb[0].mxu0
  %v716 = vpop.f32.mrb[0].mxu0
  %v717 = vpop.f32.mrb[0].mxu0
  %718 = vdwg.mxu0
  %v719 = vadd.f32 %v671, %v714
  %v720 = vmul.f32 %v719, %v41
  %v721 = vtanh.pop %v720
  %v722 = vmul.f32 %v721, %v41
  %v723 = vadd.f32 %v722, %v42
  %v724 = vmul.f32 %v723, %v657
  %726 = vrot.lane.b32.xlu0 %v723, 64
  %v727 = vpop.permute.xlu0 %726
  %v729 = vmul.f32 %v723, %v727
  %731 = vrot.lane.b32.xlu0 %v729, 32
  %v732 = vpop.permute.xlu0 %731
  %v734 = vadd.f32 %v724, %v732
  %v735 = vtanh.pop %v734
  %737 = vrot.lane.b32.xlu0 %v735, 64
  %v738 = vpop.permute.xlu0 %737
  %v740 = vmul.f32 %v723, %v738
  %742 = vrot.lane.b32.xlu0 %v740, 32
  %v743 = vpop.permute.xlu0 %742
  %s745 = scalar_lea.vmem [#allocation2], 32
  %746 = vst.msk [vmem:[%s745] sm:$0xff] %vm259, %v743
  %s747 = scalar_lea.vmem [#allocation3], 40
  %v748 = vld [vmem:[%s747] sm:$0xff]
  %v749 = vpack.c.bf16 %v740, %v740
  %751 = vrot.lane.b32.xlu0 %v749, 32
  %v752 = vpop.permute.xlu0 %751
  %v754 = vsel %vm259, %v752, 0
  %756 = vmatprep.subr.bf16.mxu0 0
  %757 = vmatpush1.bf16.msra.mxu0 %v361
  %758 = vmatprep.subr.bf16.mxu0 0
  %759 = vmatpush1.bf16.msra.mxu0 %v362
  %760 = vmatprep.subr.bf16.mxu0 0
  %761 = vmatpush1.bf16.msra.mxu0 0
  %762 = vmatprep.subr.bf16.mxu0 0
  %763 = vmatpush1.bf16.msra.mxu0 0
  %764 = vmatprep.subr.bf16.mxu0 0
  %765 = vmatpush1.bf16.msra.mxu0 0
  %766 = vmatprep.subr.bf16.mxu0 0
  %767 = vmatpush1.bf16.msra.mxu0 0
  %768 = vmatprep.subr.bf16.mxu0 0
  %769 = vmatpush1.bf16.msra.mxu0 0
  %770 = vmatprep.subr.bf16.mxu0 0
  %771 = vmatpush1.bf16.msra.mxu0 0
  %772 = vmatprep.subr.bf16.mxu0 0
  %773 = vmatpush1.bf16.msra.mxu0 0
  %774 = vmatprep.subr.bf16.mxu0 0
  %775 = vmatpush1.bf16.msra.mxu0 0
  %776 = vmatprep.subr.bf16.mxu0 0
  %777 = vmatpush1.bf16.msra.mxu0 0
  %778 = vmatprep.subr.bf16.mxu0 0
  %779 = vmatpush1.bf16.msra.mxu0 0
  %780 = vmatprep.subr.bf16.mxu0 0
  %781 = vmatpush1.bf16.msra.mxu0 0
  %782 = vmatprep.subr.bf16.mxu0 0
  %783 = vmatpush1.bf16.msra.mxu0 0
  %784 = vmatprep.subr.bf16.mxu0 0
  %785 = vmatpush1.bf16.msra.mxu0 0
  %786 = vmatprep.subr.bf16.mxu0 0
  %787 = vmatpush1.bf16.msra.mxu0 0
  %788 = vmatprep.mubr.bf16.mxu0 0
  %789 = vmatmul.mubr.bf16.gmra.mrb[0].mxu0 %v754
  %v790 = vpop.f32.mrb[0].mxu0
  %v791 = vadd.f32 0.0, %v790
  %v792 = vpop.f32.mrb[0].mxu0
  %v793 = vpop.f32.mrb[0].mxu0
  %v794 = vpop.f32.mrb[0].mxu0
  %795 = vdwg.mxu0
  %v796 = vadd.f32 %v748, %v791
  %v797 = vmul.f32 %v796, %v41
  %v798 = vtanh.pop %v797
  %v799 = vmul.f32 %v798, %v41
  %v800 = vadd.f32 %v799, %v42
  %v801 = vmul.f32 %v800, %v734
  %803 = vrot.lane.b32.xlu0 %v800, 64
  %v804 = vpop.permute.xlu0 %803
  %v806 = vmul.f32 %v800, %v804
  %808 = vrot.lane.b32.xlu0 %v806, 32
  %v809 = vpop.permute.xlu0 %808
  %v811 = vadd.f32 %v801, %v809
  %v812 = vtanh.pop %v811
  %814 = vrot.lane.b32.xlu0 %v812, 64
  %v815 = vpop.permute.xlu0 %814
  %v817 = vmul.f32 %v800, %v815
  %819 = vrot.lane.b32.xlu0 %v817, 32
  %v820 = vpop.permute.xlu0 %819
  %s822 = scalar_lea.vmem [#allocation2], 40
  %823 = vst.msk [vmem:[%s822] sm:$0xff] %vm259, %v820
  %s824 = scalar_lea.vmem [#allocation3], 48
  %v825 = vld [vmem:[%s824] sm:$0xff]
  %v826 = vpack.c.bf16 %v817, %v817
  %828 = vrot.lane.b32.xlu0 %v826, 32
  %v829 = vpop.permute.xlu0 %828
  %v831 = vsel %vm259, %v829, 0
  %833 = vmatprep.subr.bf16.mxu0 0
  %834 = vmatpush1.bf16.msra.mxu0 %v361
  %835 = vmatprep.subr.bf16.mxu0 0
  %836 = vmatpush1.bf16.msra.mxu0 %v362
  %837 = vmatprep.subr.bf16.mxu0 0
  %838 = vmatpush1.bf16.msra.mxu0 0
  %839 = vmatprep.subr.bf16.mxu0 0
  %840 = vmatpush1.bf16.msra.mxu0 0
  %841 = vmatprep.subr.bf16.mxu0 0
  %842 = vmatpush1.bf16.msra.mxu0 0
  %843 = vmatprep.subr.bf16.mxu0 0
  %844 = vmatpush1.bf16.msra.mxu0 0
  %845 = vmatprep.subr.bf16.mxu0 0
  %846 = vmatpush1.bf16.msra.mxu0 0
  %847 = vmatprep.subr.bf16.mxu0 0
  %848 = vmatpush1.bf16.msra.mxu0 0
  %849 = vmatprep.subr.bf16.mxu0 0
  %850 = vmatpush1.bf16.msra.mxu0 0
  %851 = vmatprep.subr.bf16.mxu0 0
  %852 = vmatpush1.bf16.msra.mxu0 0
  %853 = vmatprep.subr.bf16.mxu0 0
  %854 = vmatpush1.bf16.msra.mxu0 0
  %855 = vmatprep.subr.bf16.mxu0 0
  %856 = vmatpush1.bf16.msra.mxu0 0
  %857 = vmatprep.subr.bf16.mxu0 0
  %858 = vmatpush1.bf16.msra.mxu0 0
  %859 = vmatprep.subr.bf16.mxu0 0
  %860 = vmatpush1.bf16.msra.mxu0 0
  %861 = vmatprep.subr.bf16.mxu0 0
  %862 = vmatpush1.bf16.msra.mxu0 0
  %863 = vmatprep.subr.bf16.mxu0 0
  %864 = vmatpush1.bf16.msra.mxu0 0
  %865 = vmatprep.mubr.bf16.mxu0 0
  %866 = vmatmul.mubr.bf16.gmra.mrb[0].mxu0 %v831
  %v867 = vpop.f32.mrb[0].mxu0
  %v868 = vadd.f32 0.0, %v867
  %v869 = vpop.f32.mrb[0].mxu0
  %v870 = vpop.f32.mrb[0].mxu0
  %v871 = vpop.f32.mrb[0].mxu0
  %872 = vdwg.mxu0
  %v873 = vadd.f32 %v825, %v868
  %v874 = vmul.f32 %v873, %v41
  %v875 = vtanh.pop %v874
  %v876 = vmul.f32 %v875, %v41
  %v877 = vadd.f32 %v876, %v42
  %v878 = vmul.f32 %v877, %v811
  %880 = vrot.lane.b32.xlu0 %v877, 64
  %v881 = vpop.permute.xlu0 %880
  %v883 = vmul.f32 %v877, %v881
  %885 = vrot.lane.b32.xlu0 %v883, 32
  %v886 = vpop.permute.xlu0 %885
  %v888 = vadd.f32 %v878, %v886
  %v889 = vtanh.pop %v888
  %891 = vrot.lane.b32.xlu0 %v889, 64
  %v892 = vpop.permute.xlu0 %891
  %v894 = vmul.f32 %v877, %v892
  %896 = vrot.lane.b32.xlu0 %v894, 32
  %v897 = vpop.permute.xlu0 %896
  %s899 = scalar_lea.vmem [#allocation2], 48
  %900 = vst.msk [vmem:[%s899] sm:$0xff] %vm259, %v897
  %s901 = scalar_lea.vmem [#allocation3], 56
  %v902 = vld [vmem:[%s901] sm:$0xff]
  %v903 = vpack.c.bf16 %v894, %v894
  %905 = vrot.lane.b32.xlu0 %v903, 32
  %v906 = vpop.permute.xlu0 %905
  %v908 = vsel %vm259, %v906, 0
  %910 = vmatprep.subr.bf16.mxu0 0
  %911 = vmatpush1.bf16.msra.mxu0 %v361
  %912 = vmatprep.subr.bf16.mxu0 0
  %913 = vmatpush1.bf16.msra.mxu0 %v362
  %914 = vmatprep.subr.bf16.mxu0 0
  %915 = vmatpush1.bf16.msra.mxu0 0
  %916 = vmatprep.subr.bf16.mxu0 0
  %917 = vmatpush1.bf16.msra.mxu0 0
  %918 = vmatprep.subr.bf16.mxu0 0
  %919 = vmatpush1.bf16.msra.mxu0 0
  %920 = vmatprep.subr.bf16.mxu0 0
  %921 = vmatpush1.bf16.msra.mxu0 0
  %922 = vmatprep.subr.bf16.mxu0 0
  %923 = vmatpush1.bf16.msra.mxu0 0
  %924 = vmatprep.subr.bf16.mxu0 0
  %925 = vmatpush1.bf16.msra.mxu0 0
  %926 = vmatprep.subr.bf16.mxu0 0
  %927 = vmatpush1.bf16.msra.mxu0 0
  %928 = vmatprep.subr.bf16.mxu0 0
  %929 = vmatpush1.bf16.msra.mxu0 0
  %930 = vmatprep.subr.bf16.mxu0 0
  %931 = vmatpush1.bf16.msra.mxu0 0
  %932 = vmatprep.subr.bf16.mxu0 0
  %933 = vmatpush1.bf16.msra.mxu0 0
  %934 = vmatprep.subr.bf16.mxu0 0
  %935 = vmatpush1.bf16.msra.mxu0 0
  %936 = vmatprep.subr.bf16.mxu0 0
  %937 = vmatpush1.bf16.msra.mxu0 0
  %938 = vmatprep.subr.bf16.mxu0 0
  %939 = vmatpush1.bf16.msra.mxu0 0
  %940 = vmatprep.subr.bf16.mxu0 0
  %941 = vmatpush1.bf16.msra.mxu0 0
  %942 = vmatprep.mubr.bf16.mxu0 0
  %943 = vmatmul.mubr.bf16.gmra.mrb[0].mxu0 %v908
  %v944 = vpop.f32.mrb[0].mxu0
  %v945 = vadd.f32 0.0, %v944
  %v946 = vpop.f32.mrb[0].mxu0
  %v947 = vpop.f32.mrb[0].mxu0
  %v948 = vpop.f32.mrb[0].mxu0
  %949 = vdwg.mxu0
  %v950 = vadd.f32 %v902, %v945
  %v951 = vmul.f32 %v950, %v41
  %v952 = vtanh.pop %v951
  %v953 = vmul.f32 %v952, %v41
  %v954 = vadd.f32 %v953, %v42
  %v955 = vmul.f32 %v954, %v888
  %957 = vrot.lane.b32.xlu0 %v954, 64
  %v958 = vpop.permute.xlu0 %957
  %v960 = vmul.f32 %v954, %v958
  %962 = vrot.lane.b32.xlu0 %v960, 32
  %v963 = vpop.permute.xlu0 %962
  %v965 = vadd.f32 %v955, %v963
  %v966 = vtanh.pop %v965
  %968 = vrot.lane.b32.xlu0 %v966, 64
  %v969 = vpop.permute.xlu0 %968
  %v971 = vmul.f32 %v954, %v969
  %973 = vrot.lane.b32.xlu0 %v971, 32
  %v974 = vpop.permute.xlu0 %973
  %s976 = scalar_lea.vmem [#allocation2], 56
  %977 = vst.msk [vmem:[%s976] sm:$0xff] %vm259, %v974
  %978 = vst.msk [vmem:[%s10] sm:$0xff] %vm259, %v974
  %980 = vrot.lane.b32.xlu0 %v965, 96
  %v981 = vpop.permute.xlu0 %980
  %983 = vst.msk [vmem:[%s11] sm:$0xff] %vm259, %v981
  %v984 = vld [vmem:[#allocation2] sm:$0xff]
  %v985 = vld [vmem:[#allocation2 + $0x8] sm:$0xff]
  %v986 = vld [vmem:[#allocation2 + $0x10] sm:$0xff]
  %v987 = vld [vmem:[#allocation2 + $0x18] sm:$0xff]
  %v988 = vld [vmem:[#allocation2 + $0x20] sm:$0xff]
  %v989 = vld [vmem:[#allocation2 + $0x28] sm:$0xff]
  %v990 = vld [vmem:[#allocation2 + $0x30] sm:$0xff]
  %v991 = vld [vmem:[#allocation2 + $0x38] sm:$0xff]
  %v992 = vpack.c.bf16 %v985, %v984
  %v993 = vpack.c.bf16 %v987, %v986
  %v994 = vpack.c.bf16 %v989, %v988
  %v995 = vpack.c.bf16 %v991, %v990
  %s996 = scalar_lea.vmem %s2, 16
  %v997 = vld [vmem:[%s996] sm:$0xf]
  %v998 = vld [vmem:[%s996 + $0x4] sm:$0xf]
  %v999 = vld [vmem:[%s996 + $0x8] sm:$0xf]
  %v1000 = vld [vmem:[%s996 + $0xc] sm:$0xf]
  %s1001 = scalar_lea.vmem %s4, 1
  %v1002 = vld [vmem:[%s1001] sm:$0x1]
  %v1004 = vlaneseq
  %v1005 = vshrl.u32 %v1004, 7
  %v1006 = vsub.s32 0, %v1005
  %v1007 = vrot.slane %v1002, %v1006
  %v1013 = vunpack.c.l.b16 %v997
  %v1014 = vunpack.c.l.b16 %v998
  %v1015 = vunpack.c.l.b16 %v999
  %v1016 = vunpack.c.l.b16 %v1000
  %v1017 = vpack.c.b16 %v1014, %v1013
  %v1018 = vpack.c.b16 %v1016, %v1015
  %v1022 = vsel %vm259, %v992, 0
  %v1025 = vsel %vm259, %v993, 0
  %v1028 = vsel %vm259, %v994, 0
  %v1031 = vsel %vm259, %v995, 0
  %1033 = vmatprep.subr.bf16.mxu0 0
  %1034 = vmatpush1.bf16.msra.mxu0 %v1017
  %1035 = vmatprep.subr.bf16.mxu0 0
  %1036 = vmatpush1.bf16.msra.mxu0 %v1018
  %1037 = vmatprep.subr.bf16.mxu0 0
  %1038 = vmatpush1.bf16.msra.mxu0 0
  %1039 = vmatprep.subr.bf16.mxu0 0
  %1040 = vmatpush1.bf16.msra.mxu0 0
  %1041 = vmatprep.subr.bf16.mxu0 0
  %1042 = vmatpush1.bf16.msra.mxu0 0
  %1043 = vmatprep.subr.bf16.mxu0 0
  %1044 = vmatpush1.bf16.msra.mxu0 0
  %1045 = vmatprep.subr.bf16.mxu0 0
  %1046 = vmatpush1.bf16.msra.mxu0 0
  %1047 = vmatprep.subr.bf16.mxu0 0
  %1048 = vmatpush1.bf16.msra.mxu0 0
  %1049 = vmatprep.subr.bf16.mxu0 0
  %1050 = vmatpush1.bf16.msra.mxu0 0
  %1051 = vmatprep.subr.bf16.mxu0 0
  %1052 = vmatpush1.bf16.msra.mxu0 0
  %1053 = vmatprep.subr.bf16.mxu0 0
  %1054 = vmatpush1.bf16.msra.mxu0 0
  %1055 = vmatprep.subr.bf16.mxu0 0
  %1056 = vmatpush1.bf16.msra.mxu0 0
  %1057 = vmatprep.subr.bf16.mxu0 0
  %1058 = vmatpush1.bf16.msra.mxu0 0
  %1059 = vmatprep.subr.bf16.mxu0 0
  %1060 = vmatpush1.bf16.msra.mxu0 0
  %1061 = vmatprep.subr.bf16.mxu0 0
  %1062 = vmatpush1.bf16.msra.mxu0 0
  %1063 = vmatprep.subr.bf16.mxu0 0
  %1064 = vmatpush1.bf16.msra.mxu0 0
  %1065 = vmatprep.mubr.bf16.mxu0 0
  %1066 = vmatmul.mubr.bf16.gmra.mrb[0].mxu0 %v1022
  %v1067 = vpop.f32.mrb[0].mxu0
  %v1068 = vadd.f32 %v1007, %v1067
  %v1069 = vpop.f32.mrb[0].mxu0
  %v1070 = vpop.f32.mrb[0].mxu0
  %v1071 = vadd.f32 %v1007, %v1070
  %v1072 = vpop.f32.mrb[0].mxu0
  %1073 = vmatprep.mubr.bf16.mxu0 0
  %1074 = vmatmul.mubr.bf16.gmra.mrb[0].mxu0 %v1025
  %v1075 = vpop.f32.mrb[0].mxu0
  %v1076 = vadd.f32 %v1007, %v1075
  %v1077 = vpop.f32.mrb[0].mxu0
  %v1078 = vpop.f32.mrb[0].mxu0
  %v1079 = vadd.f32 %v1007, %v1078
  %v1080 = vpop.f32.mrb[0].mxu0
  %1081 = vmatprep.mubr.bf16.mxu0 0
  %1082 = vmatmul.mubr.bf16.gmra.mrb[0].mxu0 %v1028
  %v1083 = vpop.f32.mrb[0].mxu0
  %v1084 = vadd.f32 %v1007, %v1083
  %v1085 = vpop.f32.mrb[0].mxu0
  %v1086 = vpop.f32.mrb[0].mxu0
  %v1087 = vadd.f32 %v1007, %v1086
  %v1088 = vpop.f32.mrb[0].mxu0
  %1089 = vmatprep.mubr.bf16.mxu0 0
  %1090 = vmatmul.mubr.bf16.gmra.mrb[0].mxu0 %v1031
  %v1091 = vpop.f32.mrb[0].mxu0
  %v1092 = vadd.f32 %v1007, %v1091
  %v1093 = vpop.f32.mrb[0].mxu0
  %v1094 = vpop.f32.mrb[0].mxu0
  %v1095 = vadd.f32 %v1007, %v1094
  %v1096 = vpop.f32.mrb[0].mxu0
  %1097 = vdwg.mxu0
  %1098 = vst [vmem:[#allocation3] sm:$0xff] %v1068
  %1099 = vst [vmem:[#allocation3 + $0x8] sm:$0xff] %v1071
  %1100 = vst [vmem:[#allocation3 + $0x10] sm:$0xff] %v1076
  %1101 = vst [vmem:[#allocation3 + $0x18] sm:$0xff] %v1079
  %1102 = vst [vmem:[#allocation3 + $0x20] sm:$0xff] %v1084
  %1103 = vst [vmem:[#allocation3 + $0x28] sm:$0xff] %v1087
  %1104 = vst [vmem:[#allocation3 + $0x30] sm:$0xff] %v1092
  %1105 = vst [vmem:[#allocation3 + $0x38] sm:$0xff] %v1095
  %s1106 = scalar_lea.vmem %s3, 16
  %v1107 = vld [vmem:[%s1106] sm:$0xf]
  %v1108 = vld [vmem:[%s1106 + $0x4] sm:$0xf]
  %v1109 = vld [vmem:[%s1106 + $0x8] sm:$0xf]
  %v1110 = vld [vmem:[%s1106 + $0xc] sm:$0xf]
  %s1111 = scalar_lea.vmem %s5, 8
  %v1112 = vld [vmem:[%s1111] sm:$0xff]
  %s1113 = scalar_lea.vmem %s6, 8
  %v1114 = vld [vmem:[%s1113] sm:$0xff]
  %v1115 = vld [vmem:[#allocation3] sm:$0xff]
  %v1116 = vpack.c.bf16 %v1112, %v1112
  %v1121 = vunpack.c.l.b16 %v1107
  %v1122 = vunpack.c.l.b16 %v1108
  %v1123 = vunpack.c.l.b16 %v1109
  %v1124 = vunpack.c.l.b16 %v1110
  %v1125 = vpack.c.b16 %v1122, %v1121
  %v1126 = vpack.c.b16 %v1124, %v1123
  %v1130 = vsel %vm259, %v1116, 0
  %1132 = vmatprep.subr.bf16.mxu0 0
  %1133 = vmatpush1.bf16.msra.mxu0 %v1125
  %1134 = vmatprep.subr.bf16.mxu0 0
  %1135 = vmatpush1.bf16.msra.mxu0 %v1126
  %1136 = vmatprep.subr.bf16.mxu0 0
  %1137 = vmatpush1.bf16.msra.mxu0 0
  %1138 = vmatprep.subr.bf16.mxu0 0
  %1139 = vmatpush1.bf16.msra.mxu0 0
  %1140 = vmatprep.subr.bf16.mxu0 0
  %1141 = vmatpush1.bf16.msra.mxu0 0
  %1142 = vmatprep.subr.bf16.mxu0 0
  %1143 = vmatpush1.bf16.msra.mxu0 0
  %1144 = vmatprep.subr.bf16.mxu0 0
  %1145 = vmatpush1.bf16.msra.mxu0 0
  %1146 = vmatprep.subr.bf16.mxu0 0
  %1147 = vmatpush1.bf16.msra.mxu0 0
  %1148 = vmatprep.subr.bf16.mxu0 0
  %1149 = vmatpush1.bf16.msra.mxu0 0
  %1150 = vmatprep.subr.bf16.mxu0 0
  %1151 = vmatpush1.bf16.msra.mxu0 0
  %1152 = vmatprep.subr.bf16.mxu0 0
  %1153 = vmatpush1.bf16.msra.mxu0 0
  %1154 = vmatprep.subr.bf16.mxu0 0
  %1155 = vmatpush1.bf16.msra.mxu0 0
  %1156 = vmatprep.subr.bf16.mxu0 0
  %1157 = vmatpush1.bf16.msra.mxu0 0
  %1158 = vmatprep.subr.bf16.mxu0 0
  %1159 = vmatpush1.bf16.msra.mxu0 0
  %1160 = vmatprep.subr.bf16.mxu0 0
  %1161 = vmatpush1.bf16.msra.mxu0 0
  %1162 = vmatprep.subr.bf16.mxu0 0
  %1163 = vmatpush1.bf16.msra.mxu0 0
  %1164 = vmatprep.mubr.bf16.mxu0 0
  %1165 = vmatmul.mubr.bf16.gmra.mrb[0].mxu0 %v1130
  %v1166 = vpop.f32.mrb[0].mxu0
  %v1167 = vadd.f32 0.0, %v1166
  %v1168 = vpop.f32.mrb[0].mxu0
  %v1169 = vpop.f32.mrb[0].mxu0
  %v1170 = vpop.f32.mrb[0].mxu0
  %1171 = vdwg.mxu0
  %v1172 = vadd.f32 %v1115, %v1167
  %v1173 = vmul.f32 %v1172, %v41
  %v1174 = vtanh.pop %v1173
  %v1175 = vmul.f32 %v1174, %v41
  %v1176 = vadd.f32 %v1175, %v42
  %1178 = vrot.lane.b32.xlu0 %v1114, 32
  %v1179 = vpop.permute.xlu0 %1178
  %v1181 = vmul.f32 %v1176, %v1179
  %1183 = vrot.lane.b32.xlu0 %v1176, 64
  %v1184 = vpop.permute.xlu0 %1183
  %v1186 = vmul.f32 %v1176, %v1184
  %1188 = vrot.lane.b32.xlu0 %v1186, 32
  %v1189 = vpop.permute.xlu0 %1188
  %v1191 = vadd.f32 %v1181, %v1189
  %v1192 = vtanh.pop %v1191
  %1194 = vrot.lane.b32.xlu0 %v1192, 64
  %v1195 = vpop.permute.xlu0 %1194
  %v1197 = vmul.f32 %v1176, %v1195
  %1199 = vrot.lane.b32.xlu0 %v1197, 32
  %v1200 = vpop.permute.xlu0 %1199
  %1202 = vst.msk [vmem:[#allocation2] sm:$0xff] %vm259, %v1200
  %v1203 = vld [vmem:[%s439] sm:$0xff]
  %v1204 = vpack.c.bf16 %v1197, %v1197
  %1206 = vrot.lane.b32.xlu0 %v1204, 32
  %v1207 = vpop.permute.xlu0 %1206
  %v1209 = vsel %vm259, %v1207, 0
  %1211 = vmatprep.subr.bf16.mxu0 0
  %1212 = vmatpush1.bf16.msra.mxu0 %v1125
  %1213 = vmatprep.subr.bf16.mxu0 0
  %1214 = vmatpush1.bf16.msra.mxu0 %v1126
  %1215 = vmatprep.subr.bf16.mxu0 0
  %1216 = vmatpush1.bf16.msra.mxu0 0
  %1217 = vmatprep.subr.bf16.mxu0 0
  %1218 = vmatpush1.bf16.msra.mxu0 0
  %1219 = vmatprep.subr.bf16.mxu0 0
  %1220 = vmatpush1.bf16.msra.mxu0 0
  %1221 = vmatprep.subr.bf16.mxu0 0
  %1222 = vmatpush1.bf16.msra.mxu0 0
  %1223 = vmatprep.subr.bf16.mxu0 0
  %1224 = vmatpush1.bf16.msra.mxu0 0
  %1225 = vmatprep.subr.bf16.mxu0 0
  %1226 = vmatpush1.bf16.msra.mxu0 0
  %1227 = vmatprep.subr.bf16.mxu0 0
  %1228 = vmatpush1.bf16.msra.mxu0 0
  %1229 = vmatprep.subr.bf16.mxu0 0
  %1230 = vmatpush1.bf16.msra.mxu0 0
  %1231 = vmatprep.subr.bf16.mxu0 0
  %1232 = vmatpush1.bf16.msra.mxu0 0
  %1233 = vmatprep.subr.bf16.mxu0 0
  %1234 = vmatpush1.bf16.msra.mxu0 0
  %1235 = vmatprep.subr.bf16.mxu0 0
  %1236 = vmatpush1.bf16.msra.mxu0 0
  %1237 = vmatprep.subr.bf16.mxu0 0
  %1238 = vmatpush1.bf16.msra.mxu0 0
  %1239 = vmatprep.subr.bf16.mxu0 0
  %1240 = vmatpush1.bf16.msra.mxu0 0
  %1241 = vmatprep.subr.bf16.mxu0 0
  %1242 = vmatpush1.bf16.msra.mxu0 0
  %1243 = vmatprep.mubr.bf16.mxu0 0
  %1244 = vmatmul.mubr.bf16.gmra.mrb[0].mxu0 %v1209
  %v1245 = vpop.f32.mrb[0].mxu0
  %v1246 = vadd.f32 0.0, %v1245
  %v1247 = vpop.f32.mrb[0].mxu0
  %v1248 = vpop.f32.mrb[0].mxu0
  %v1249 = vpop.f32.mrb[0].mxu0
  %1250 = vdwg.mxu0
  %v1251 = vadd.f32 %v1203, %v1246
  %v1252 = vmul.f32 %v1251, %v41
  %v1253 = vtanh.pop %v1252
  %v1254 = vmul.f32 %v1253, %v41
  %v1255 = vadd.f32 %v1254, %v42
  %v1256 = vmul.f32 %v1255, %v1191
  %1258 = vrot.lane.b32.xlu0 %v1255, 64
  %v1259 = vpop.permute.xlu0 %1258
  %v1261 = vmul.f32 %v1255, %v1259
  %1263 = vrot.lane.b32.xlu0 %v1261, 32
  %v1264 = vpop.permute.xlu0 %1263
  %v1266 = vadd.f32 %v1256, %v1264
  %v1267 = vtanh.pop %v1266
  %1269 = vrot.lane.b32.xlu0 %v1267, 64
  %v1270 = vpop.permute.xlu0 %1269
  %v1272 = vmul.f32 %v1255, %v1270
  %1274 = vrot.lane.b32.xlu0 %v1272, 32
  %v1275 = vpop.permute.xlu0 %1274
  %1277 = vst.msk [vmem:[%s514] sm:$0xff] %vm259, %v1275
  %v1278 = vld [vmem:[%s516] sm:$0xff]
  %v1279 = vpack.c.bf16 %v1272, %v1272
  %1281 = vrot.lane.b32.xlu0 %v1279, 32
  %v1282 = vpop.permute.xlu0 %1281
  %v1284 = vsel %vm259, %v1282, 0
  %1286 = vmatprep.subr.bf16.mxu0 0
  %1287 = vmatpush1.bf16.msra.mxu0 %v1125
  %1288 = vmatprep.subr.bf16.mxu0 0
  %1289 = vmatpush1.bf16.msra.mxu0 %v1126
  %1290 = vmatprep.subr.bf16.mxu0 0
  %1291 = vmatpush1.bf16.msra.mxu0 0
  %1292 = vmatprep.subr.bf16.mxu0 0
  %1293 = vmatpush1.bf16.msra.mxu0 0
  %1294 = vmatprep.subr.bf16.mxu0 0
  %1295 = vmatpush1.bf16.msra.mxu0 0
  %1296 = vmatprep.subr.bf16.mxu0 0
  %1297 = vmatpush1.bf16.msra.mxu0 0
  %1298 = vmatprep.subr.bf16.mxu0 0
  %1299 = vmatpush1.bf16.msra.mxu0 0
  %1300 = vmatprep.subr.bf16.mxu0 0
  %1301 = vmatpush1.bf16.msra.mxu0 0
  %1302 = vmatprep.subr.bf16.mxu0 0
  %1303 = vmatpush1.bf16.msra.mxu0 0
  %1304 = vmatprep.subr.bf16.mxu0 0
  %1305 = vmatpush1.bf16.msra.mxu0 0
  %1306 = vmatprep.subr.bf16.mxu0 0
  %1307 = vmatpush1.bf16.msra.mxu0 0
  %1308 = vmatprep.subr.bf16.mxu0 0
  %1309 = vmatpush1.bf16.msra.mxu0 0
  %1310 = vmatprep.subr.bf16.mxu0 0
  %1311 = vmatpush1.bf16.msra.mxu0 0
  %1312 = vmatprep.subr.bf16.mxu0 0
  %1313 = vmatpush1.bf16.msra.mxu0 0
  %1314 = vmatprep.subr.bf16.mxu0 0
  %1315 = vmatpush1.bf16.msra.mxu0 0
  %1316 = vmatprep.subr.bf16.mxu0 0
  %1317 = vmatpush1.bf16.msra.mxu0 0
  %1318 = vmatprep.mubr.bf16.mxu0 0
  %1319 = vmatmul.mubr.bf16.gmra.mrb[0].mxu0 %v1284
  %v1320 = vpop.f32.mrb[0].mxu0
  %v1321 = vadd.f32 0.0, %v1320
  %v1322 = vpop.f32.mrb[0].mxu0
  %v1323 = vpop.f32.mrb[0].mxu0
  %v1324 = vpop.f32.mrb[0].mxu0
  %1325 = vdwg.mxu0
  %v1326 = vadd.f32 %v1278, %v1321
  %v1327 = vmul.f32 %v1326, %v41
  %v1328 = vtanh.pop %v1327
  %v1329 = vmul.f32 %v1328, %v41
  %v1330 = vadd.f32 %v1329, %v42
  %v1331 = vmul.f32 %v1330, %v1266
  %1333 = vrot.lane.b32.xlu0 %v1330, 64
  %v1334 = vpop.permute.xlu0 %1333
  %v1336 = vmul.f32 %v1330, %v1334
  %1338 = vrot.lane.b32.xlu0 %v1336, 32
  %v1339 = vpop.permute.xlu0 %1338
  %v1341 = vadd.f32 %v1331, %v1339
  %v1342 = vtanh.pop %v1341
  %1344 = vrot.lane.b32.xlu0 %v1342, 64
  %v1345 = vpop.permute.xlu0 %1344
  %v1347 = vmul.f32 %v1330, %v1345
  %1349 = vrot.lane.b32.xlu0 %v1347, 32
  %v1350 = vpop.permute.xlu0 %1349
  %1352 = vst.msk [vmem:[%s591] sm:$0xff] %vm259, %v1350
  %v1353 = vld [vmem:[%s593] sm:$0xff]
  %v1354 = vpack.c.bf16 %v1347, %v1347
  %1356 = vrot.lane.b32.xlu0 %v1354, 32
  %v1357 = vpop.permute.xlu0 %1356
  %v1359 = vsel %vm259, %v1357, 0
  %1361 = vmatprep.subr.bf16.mxu0 0
  %1362 = vmatpush1.bf16.msra.mxu0 %v1125
  %1363 = vmatprep.subr.bf16.mxu0 0
  %1364 = vmatpush1.bf16.msra.mxu0 %v1126
  %1365 = vmatprep.subr.bf16.mxu0 0
  %1366 = vmatpush1.bf16.msra.mxu0 0
  %1367 = vmatprep.subr.bf16.mxu0 0
  %1368 = vmatpush1.bf16.msra.mxu0 0
  %1369 = vmatprep.subr.bf16.mxu0 0
  %1370 = vmatpush1.bf16.msra.mxu0 0
  %1371 = vmatprep.subr.bf16.mxu0 0
  %1372 = vmatpush1.bf16.msra.mxu0 0
  %1373 = vmatprep.subr.bf16.mxu0 0
  %1374 = vmatpush1.bf16.msra.mxu0 0
  %1375 = vmatprep.subr.bf16.mxu0 0
  %1376 = vmatpush1.bf16.msra.mxu0 0
  %1377 = vmatprep.subr.bf16.mxu0 0
  %1378 = vmatpush1.bf16.msra.mxu0 0
  %1379 = vmatprep.subr.bf16.mxu0 0
  %1380 = vmatpush1.bf16.msra.mxu0 0
  %1381 = vmatprep.subr.bf16.mxu0 0
  %1382 = vmatpush1.bf16.msra.mxu0 0
  %1383 = vmatprep.subr.bf16.mxu0 0
  %1384 = vmatpush1.bf16.msra.mxu0 0
  %1385 = vmatprep.subr.bf16.mxu0 0
  %1386 = vmatpush1.bf16.msra.mxu0 0
  %1387 = vmatprep.subr.bf16.mxu0 0
  %1388 = vmatpush1.bf16.msra.mxu0 0
  %1389 = vmatprep.subr.bf16.mxu0 0
  %1390 = vmatpush1.bf16.msra.mxu0 0
  %1391 = vmatprep.subr.bf16.mxu0 0
  %1392 = vmatpush1.bf16.msra.mxu0 0
  %1393 = vmatprep.mubr.bf16.mxu0 0
  %1394 = vmatmul.mubr.bf16.gmra.mrb[0].mxu0 %v1359
  %v1395 = vpop.f32.mrb[0].mxu0
  %v1396 = vadd.f32 0.0, %v1395
  %v1397 = vpop.f32.mrb[0].mxu0
  %v1398 = vpop.f32.mrb[0].mxu0
  %v1399 = vpop.f32.mrb[0].mxu0
  %1400 = vdwg.mxu0
  %v1401 = vadd.f32 %v1353, %v1396
  %v1402 = vmul.f32 %v1401, %v41
  %v1403 = vtanh.pop %v1402
  %v1404 = vmul.f32 %v1403, %v41
  %v1405 = vadd.f32 %v1404, %v42
  %v1406 = vmul.f32 %v1405, %v1341
  %1408 = vrot.lane.b32.xlu0 %v1405, 64
  %v1409 = vpop.permute.xlu0 %1408
  %v1411 = vmul.f32 %v1405, %v1409
  %1413 = vrot.lane.b32.xlu0 %v1411, 32
  %v1414 = vpop.permute.xlu0 %1413
  %v1416 = vadd.f32 %v1406, %v1414
  %v1417 = vtanh.pop %v1416
  %1419 = vrot.lane.b32.xlu0 %v1417, 64
  %v1420 = vpop.permute.xlu0 %1419
  %v1422 = vmul.f32 %v1405, %v1420
  %1424 = vrot.lane.b32.xlu0 %v1422, 32
  %v1425 = vpop.permute.xlu0 %1424
  %1427 = vst.msk [vmem:[%s668] sm:$0xff] %vm259, %v1425
  %v1428 = vld [vmem:[%s670] sm:$0xff]
  %v1429 = vpack.c.bf16 %v1422, %v1422
  %1431 = vrot.lane.b32.xlu0 %v1429, 32
  %v1432 = vpop.permute.xlu0 %1431
  %v1434 = vsel %vm259, %v1432, 0
  %1436 = vmatprep.subr.bf16.mxu0 0
  %1437 = vmatpush1.bf16.msra.mxu0 %v1125
  %1438 = vmatprep.subr.bf16.mxu0 0
  %1439 = vmatpush1.bf16.msra.mxu0 %v1126
  %1440 = vmatprep.subr.bf16.mxu0 0
  %1441 = vmatpush1.bf16.msra.mxu0 0
  %1442 = vmatprep.subr.bf16.mxu0 0
  %1443 = vmatpush1.bf16.msra.mxu0 0
  %1444 = vmatprep.subr.bf16.mxu0 0
  %1445 = vmatpush1.bf16.msra.mxu0 0
  %1446 = vmatprep.subr.bf16.mxu0 0
  %1447 = vmatpush1.bf16.msra.mxu0 0
  %1448 = vmatprep.subr.bf16.mxu0 0
  %1449 = vmatpush1.bf16.msra.mxu0 0
  %1450 = vmatprep.subr.bf16.mxu0 0
  %1451 = vmatpush1.bf16.msra.mxu0 0
  %1452 = vmatprep.subr.bf16.mxu0 0
  %1453 = vmatpush1.bf16.msra.mxu0 0
  %1454 = vmatprep.subr.bf16.mxu0 0
  %1455 = vmatpush1.bf16.msra.mxu0 0
  %1456 = vmatprep.subr.bf16.mxu0 0
  %1457 = vmatpush1.bf16.msra.mxu0 0
  %1458 = vmatprep.subr.bf16.mxu0 0
  %1459 = vmatpush1.bf16.msra.mxu0 0
  %1460 = vmatprep.subr.bf16.mxu0 0
  %1461 = vmatpush1.bf16.msra.mxu0 0
  %1462 = vmatprep.subr.bf16.mxu0 0
  %1463 = vmatpush1.bf16.msra.mxu0 0
  %1464 = vmatprep.subr.bf16.mxu0 0
  %1465 = vmatpush1.bf16.msra.mxu0 0
  %1466 = vmatprep.subr.bf16.mxu0 0
  %1467 = vmatpush1.bf16.msra.mxu0 0
  %1468 = vmatprep.mubr.bf16.mxu0 0
  %1469 = vmatmul.mubr.bf16.gmra.mrb[0].mxu0 %v1434
  %v1470 = vpop.f32.mrb[0].mxu0
  %v1471 = vadd.f32 0.0, %v1470
  %v1472 = vpop.f32.mrb[0].mxu0
  %v1473 = vpop.f32.mrb[0].mxu0
  %v1474 = vpop.f32.mrb[0].mxu0
  %1475 = vdwg.mxu0
  %v1476 = vadd.f32 %v1428, %v1471
  %v1477 = vmul.f32 %v1476, %v41
  %v1478 = vtanh.pop %v1477
  %v1479 = vmul.f32 %v1478, %v41
  %v1480 = vadd.f32 %v1479, %v42
  %v1481 = vmul.f32 %v1480, %v1416
  %1483 = vrot.lane.b32.xlu0 %v1480, 64
  %v1484 = vpop.permute.xlu0 %1483
  %v1486 = vmul.f32 %v1480, %v1484
  %1488 = vrot.lane.b32.xlu0 %v1486, 32
  %v1489 = vpop.permute.xlu0 %1488
  %v1491 = vadd.f32 %v1481, %v1489
  %v1492 = vtanh.pop %v1491
  %1494 = vrot.lane.b32.xlu0 %v1492, 64
  %v1495 = vpop.permute.xlu0 %1494
  %v1497 = vmul.f32 %v1480, %v1495
  %1499 = vrot.lane.b32.xlu0 %v1497, 32
  %v1500 = vpop.permute.xlu0 %1499
  %1502 = vst.msk [vmem:[%s745] sm:$0xff] %vm259, %v1500
  %v1503 = vld [vmem:[%s747] sm:$0xff]
  %v1504 = vpack.c.bf16 %v1497, %v1497
  %1506 = vrot.lane.b32.xlu0 %v1504, 32
  %v1507 = vpop.permute.xlu0 %1506
  %v1509 = vsel %vm259, %v1507, 0
  %1511 = vmatprep.subr.bf16.mxu0 0
  %1512 = vmatpush1.bf16.msra.mxu0 %v1125
  %1513 = vmatprep.subr.bf16.mxu0 0
  %1514 = vmatpush1.bf16.msra.mxu0 %v1126
  %1515 = vmatprep.subr.bf16.mxu0 0
  %1516 = vmatpush1.bf16.msra.mxu0 0
  %1517 = vmatprep.subr.bf16.mxu0 0
  %1518 = vmatpush1.bf16.msra.mxu0 0
  %1519 = vmatprep.subr.bf16.mxu0 0
  %1520 = vmatpush1.bf16.msra.mxu0 0
  %1521 = vmatprep.subr.bf16.mxu0 0
  %1522 = vmatpush1.bf16.msra.mxu0 0
  %1523 = vmatprep.subr.bf16.mxu0 0
  %1524 = vmatpush1.bf16.msra.mxu0 0
  %1525 = vmatprep.subr.bf16.mxu0 0
  %1526 = vmatpush1.bf16.msra.mxu0 0
  %1527 = vmatprep.subr.bf16.mxu0 0
  %1528 = vmatpush1.bf16.msra.mxu0 0
  %1529 = vmatprep.subr.bf16.mxu0 0
  %1530 = vmatpush1.bf16.msra.mxu0 0
  %1531 = vmatprep.subr.bf16.mxu0 0
  %1532 = vmatpush1.bf16.msra.mxu0 0
  %1533 = vmatprep.subr.bf16.mxu0 0
  %1534 = vmatpush1.bf16.msra.mxu0 0
  %1535 = vmatprep.subr.bf16.mxu0 0
  %1536 = vmatpush1.bf16.msra.mxu0 0
  %1537 = vmatprep.subr.bf16.mxu0 0
  %1538 = vmatpush1.bf16.msra.mxu0 0
  %1539 = vmatprep.subr.bf16.mxu0 0
  %1540 = vmatpush1.bf16.msra.mxu0 0
  %1541 = vmatprep.subr.bf16.mxu0 0
  %1542 = vmatpush1.bf16.msra.mxu0 0
  %1543 = vmatprep.mubr.bf16.mxu0 0
  %1544 = vmatmul.mubr.bf16.gmra.mrb[0].mxu0 %v1509
  %v1545 = vpop.f32.mrb[0].mxu0
  %v1546 = vadd.f32 0.0, %v1545
  %v1547 = vpop.f32.mrb[0].mxu0
  %v1548 = vpop.f32.mrb[0].mxu0
  %v1549 = vpop.f32.mrb[0].mxu0
  %1550 = vdwg.mxu0
  %v1551 = vadd.f32 %v1503, %v1546
  %v1552 = vmul.f32 %v1551, %v41
  %v1553 = vtanh.pop %v1552
  %v1554 = vmul.f32 %v1553, %v41
  %v1555 = vadd.f32 %v1554, %v42
  %v1556 = vmul.f32 %v1555, %v1491
  %1558 = vrot.lane.b32.xlu0 %v1555, 64
  %v1559 = vpop.permute.xlu0 %1558
  %v1561 = vmul.f32 %v1555, %v1559
  %1563 = vrot.lane.b32.xlu0 %v1561, 32
  %v1564 = vpop.permute.xlu0 %1563
  %v1566 = vadd.f32 %v1556, %v1564
  %v1567 = vtanh.pop %v1566
  %1569 = vrot.lane.b32.xlu0 %v1567, 64
  %v1570 = vpop.permute.xlu0 %1569
  %v1572 = vmul.f32 %v1555, %v1570
  %1574 = vrot.lane.b32.xlu0 %v1572, 32
  %v1575 = vpop.permute.xlu0 %1574
  %1577 = vst.msk [vmem:[%s822] sm:$0xff] %vm259, %v1575
  %v1578 = vld [vmem:[%s824] sm:$0xff]
  %v1579 = vpack.c.bf16 %v1572, %v1572
  %1581 = vrot.lane.b32.xlu0 %v1579, 32
  %v1582 = vpop.permute.xlu0 %1581
  %v1584 = vsel %vm259, %v1582, 0
  %1586 = vmatprep.subr.bf16.mxu0 0
  %1587 = vmatpush1.bf16.msra.mxu0 %v1125
  %1588 = vmatprep.subr.bf16.mxu0 0
  %1589 = vmatpush1.bf16.msra.mxu0 %v1126
  %1590 = vmatprep.subr.bf16.mxu0 0
  %1591 = vmatpush1.bf16.msra.mxu0 0
  %1592 = vmatprep.subr.bf16.mxu0 0
  %1593 = vmatpush1.bf16.msra.mxu0 0
  %1594 = vmatprep.subr.bf16.mxu0 0
  %1595 = vmatpush1.bf16.msra.mxu0 0
  %1596 = vmatprep.subr.bf16.mxu0 0
  %1597 = vmatpush1.bf16.msra.mxu0 0
  %1598 = vmatprep.subr.bf16.mxu0 0
  %1599 = vmatpush1.bf16.msra.mxu0 0
  %1600 = vmatprep.subr.bf16.mxu0 0
  %1601 = vmatpush1.bf16.msra.mxu0 0
  %1602 = vmatprep.subr.bf16.mxu0 0
  %1603 = vmatpush1.bf16.msra.mxu0 0
  %1604 = vmatprep.subr.bf16.mxu0 0
  %1605 = vmatpush1.bf16.msra.mxu0 0
  %1606 = vmatprep.subr.bf16.mxu0 0
  %1607 = vmatpush1.bf16.msra.mxu0 0
  %1608 = vmatprep.subr.bf16.mxu0 0
  %1609 = vmatpush1.bf16.msra.mxu0 0
  %1610 = vmatprep.subr.bf16.mxu0 0
  %1611 = vmatpush1.bf16.msra.mxu0 0
  %1612 = vmatprep.subr.bf16.mxu0 0
  %1613 = vmatpush1.bf16.msra.mxu0 0
  %1614 = vmatprep.subr.bf16.mxu0 0
  %1615 = vmatpush1.bf16.msra.mxu0 0
  %1616 = vmatprep.subr.bf16.mxu0 0
  %1617 = vmatpush1.bf16.msra.mxu0 0
  %1618 = vmatprep.mubr.bf16.mxu0 0
  %1619 = vmatmul.mubr.bf16.gmra.mrb[0].mxu0 %v1584
  %v1620 = vpop.f32.mrb[0].mxu0
  %v1621 = vadd.f32 0.0, %v1620
  %v1622 = vpop.f32.mrb[0].mxu0
  %v1623 = vpop.f32.mrb[0].mxu0
  %v1624 = vpop.f32.mrb[0].mxu0
  %1625 = vdwg.mxu0
  %v1626 = vadd.f32 %v1578, %v1621
  %v1627 = vmul.f32 %v1626, %v41
  %v1628 = vtanh.pop %v1627
  %v1629 = vmul.f32 %v1628, %v41
  %v1630 = vadd.f32 %v1629, %v42
  %v1631 = vmul.f32 %v1630, %v1566
  %1633 = vrot.lane.b32.xlu0 %v1630, 64
  %v1634 = vpop.permute.xlu0 %1633
  %v1636 = vmul.f32 %v1630, %v1634
  %1638 = vrot.lane.b32.xlu0 %v1636, 32
  %v1639 = vpop.permute.xlu0 %1638
  %v1641 = vadd.f32 %v1631, %v1639
  %v1642 = vtanh.pop %v1641
  %1644 = vrot.lane.b32.xlu0 %v1642, 64
  %v1645 = vpop.permute.xlu0 %1644
  %v1647 = vmul.f32 %v1630, %v1645
  %1649 = vrot.lane.b32.xlu0 %v1647, 32
  %v1650 = vpop.permute.xlu0 %1649
  %1652 = vst.msk [vmem:[%s899] sm:$0xff] %vm259, %v1650
  %v1653 = vld [vmem:[%s901] sm:$0xff]
  %v1654 = vpack.c.bf16 %v1647, %v1647
  %1656 = vrot.lane.b32.xlu0 %v1654, 32
  %v1657 = vpop.permute.xlu0 %1656
  %v1659 = vsel %vm259, %v1657, 0
  %1661 = vmatprep.subr.bf16.mxu0 0
  %1662 = vmatpush1.bf16.msra.mxu0 %v1125
  %1663 = vmatprep.subr.bf16.mxu0 0
  %1664 = vmatpush1.bf16.msra.mxu0 %v1126
  %1665 = vmatprep.subr.bf16.mxu0 0
  %1666 = vmatpush1.bf16.msra.mxu0 0
  %1667 = vmatprep.subr.bf16.mxu0 0
  %1668 = vmatpush1.bf16.msra.mxu0 0
  %1669 = vmatprep.subr.bf16.mxu0 0
  %1670 = vmatpush1.bf16.msra.mxu0 0
  %1671 = vmatprep.subr.bf16.mxu0 0
  %1672 = vmatpush1.bf16.msra.mxu0 0
  %1673 = vmatprep.subr.bf16.mxu0 0
  %1674 = vmatpush1.bf16.msra.mxu0 0
  %1675 = vmatprep.subr.bf16.mxu0 0
  %1676 = vmatpush1.bf16.msra.mxu0 0
  %1677 = vmatprep.subr.bf16.mxu0 0
  %1678 = vmatpush1.bf16.msra.mxu0 0
  %1679 = vmatprep.subr.bf16.mxu0 0
  %1680 = vmatpush1.bf16.msra.mxu0 0
  %1681 = vmatprep.subr.bf16.mxu0 0
  %1682 = vmatpush1.bf16.msra.mxu0 0
  %1683 = vmatprep.subr.bf16.mxu0 0
  %1684 = vmatpush1.bf16.msra.mxu0 0
  %1685 = vmatprep.subr.bf16.mxu0 0
  %1686 = vmatpush1.bf16.msra.mxu0 0
  %1687 = vmatprep.subr.bf16.mxu0 0
  %1688 = vmatpush1.bf16.msra.mxu0 0
  %1689 = vmatprep.subr.bf16.mxu0 0
  %1690 = vmatpush1.bf16.msra.mxu0 0
  %1691 = vmatprep.subr.bf16.mxu0 0
  %1692 = vmatpush1.bf16.msra.mxu0 0
  %1693 = vmatprep.mubr.bf16.mxu0 0
  %1694 = vmatmul.mubr.bf16.gmra.mrb[0].mxu0 %v1659
  %v1695 = vpop.f32.mrb[0].mxu0
  %v1696 = vadd.f32 0.0, %v1695
  %v1697 = vpop.f32.mrb[0].mxu0
  %v1698 = vpop.f32.mrb[0].mxu0
  %v1699 = vpop.f32.mrb[0].mxu0
  %1700 = vdwg.mxu0
  %v1701 = vadd.f32 %v1653, %v1696
  %v1702 = vmul.f32 %v1701, %v41
  %v1703 = vtanh.pop %v1702
  %v1704 = vmul.f32 %v1703, %v41
  %v1705 = vadd.f32 %v1704, %v42
  %v1706 = vmul.f32 %v1705, %v1641
  %1708 = vrot.lane.b32.xlu0 %v1705, 64
  %v1709 = vpop.permute.xlu0 %1708
  %v1711 = vmul.f32 %v1705, %v1709
  %1713 = vrot.lane.b32.xlu0 %v1711, 32
  %v1714 = vpop.permute.xlu0 %1713
  %v1716 = vadd.f32 %v1706, %v1714
  %v1717 = vtanh.pop %v1716
  %1719 = vrot.lane.b32.xlu0 %v1717, 64
  %v1720 = vpop.permute.xlu0 %1719
  %v1722 = vmul.f32 %v1705, %v1720
  %1724 = vrot.lane.b32.xlu0 %v1722, 32
  %v1725 = vpop.permute.xlu0 %1724
  %1727 = vst.msk [vmem:[%s976] sm:$0xff] %vm259, %v1725
  %s1728 = scalar_lea.vmem %s10, 8
  %1729 = vst.msk [vmem:[%s1728] sm:$0xff] %vm259, %v1725
  %1731 = vrot.lane.b32.xlu0 %v1716, 96
  %v1732 = vpop.permute.xlu0 %1731
  %s1734 = scalar_lea.vmem %s11, 8
  %1735 = vst.msk [vmem:[%s1734] sm:$0xff] %vm259, %v1732
  %v1736 = vld [vmem:[#allocation2] sm:$0xff]
  %v1737 = vld [vmem:[#allocation2 + $0x8] sm:$0xff]
  %v1738 = vld [vmem:[#allocation2 + $0x10] sm:$0xff]
  %v1739 = vld [vmem:[#allocation2 + $0x18] sm:$0xff]
  %v1740 = vld [vmem:[#allocation2 + $0x20] sm:$0xff]
  %v1741 = vld [vmem:[#allocation2 + $0x28] sm:$0xff]
  %v1742 = vld [vmem:[#allocation2 + $0x30] sm:$0xff]
  %v1743 = vld [vmem:[#allocation2 + $0x38] sm:$0xff]
  %v1744 = vpack.c.bf16 %v1737, %v1736
  %v1745 = vpack.c.bf16 %v1739, %v1738
  %v1746 = vpack.c.bf16 %v1741, %v1740
  %v1747 = vpack.c.bf16 %v1743, %v1742
  %v1748 = vld [vmem:[%s7] sm:$0xf]
  %v1749 = vld [vmem:[%s7 + $0x4] sm:$0xf]
  %v1750 = vld [vmem:[%s7 + $0x8] sm:$0xf]
  %v1751 = vld [vmem:[%s7 + $0xc] sm:$0xf]
  %v1752 = vld [vmem:[%s8] sm:$0x1]
  %v1754 = vlaneseq
  %v1755 = vshrl.u32 %v1754, 7
  %v1756 = vsub.s32 0, %v1755
  %v1757 = vrot.slane %v1752, %v1756
  %v1763 = vunpack.c.l.b16 %v1748
  %v1764 = vunpack.c.l.b16 %v1749
  %v1765 = vunpack.c.l.b16 %v1750
  %v1766 = vunpack.c.l.b16 %v1751
  %v1767 = vpack.c.b16 %v1764, %v1763
  %v1768 = vpack.c.b16 %v1766, %v1765
  %v1772 = vsel %vm259, %v1744, 0
  %v1775 = vsel %vm259, %v1745, 0
  %v1778 = vsel %vm259, %v1746, 0
  %v1781 = vsel %vm259, %v1747, 0
  %1783 = vmatprep.subr.bf16.mxu0 0
  %1784 = vmatpush1.bf16.msra.mxu0 %v1767
  %1785 = vmatprep.subr.bf16.mxu0 0
  %1786 = vmatpush1.bf16.msra.mxu0 %v1768
  %1787 = vmatprep.subr.bf16.mxu0 0
  %1788 = vmatpush1.bf16.msra.mxu0 0
  %1789 = vmatprep.subr.bf16.mxu0 0
  %1790 = vmatpush1.bf16.msra.mxu0 0
  %1791 = vmatprep.subr.bf16.mxu0 0
  %1792 = vmatpush1.bf16.msra.mxu0 0
  %1793 = vmatprep.subr.bf16.mxu0 0
  %1794 = vmatpush1.bf16.msra.mxu0 0
  %1795 = vmatprep.subr.bf16.mxu0 0
  %1796 = vmatpush1.bf16.msra.mxu0 0
  %1797 = vmatprep.subr.bf16.mxu0 0
  %1798 = vmatpush1.bf16.msra.mxu0 0
  %1799 = vmatprep.subr.bf16.mxu0 0
  %1800 = vmatpush1.bf16.msra.mxu0 0
  %1801 = vmatprep.subr.bf16.mxu0 0
  %1802 = vmatpush1.bf16.msra.mxu0 0
  %1803 = vmatprep.subr.bf16.mxu0 0
  %1804 = vmatpush1.bf16.msra.mxu0 0
  %1805 = vmatprep.subr.bf16.mxu0 0
  %1806 = vmatpush1.bf16.msra.mxu0 0
  %1807 = vmatprep.subr.bf16.mxu0 0
  %1808 = vmatpush1.bf16.msra.mxu0 0
  %1809 = vmatprep.subr.bf16.mxu0 0
  %1810 = vmatpush1.bf16.msra.mxu0 0
  %1811 = vmatprep.subr.bf16.mxu0 0
  %1812 = vmatpush1.bf16.msra.mxu0 0
  %1813 = vmatprep.subr.bf16.mxu0 0
  %1814 = vmatpush1.bf16.msra.mxu0 0
  %1815 = vmatprep.mubr.bf16.mxu0 0
  %1816 = vmatmul.mubr.bf16.gmra.mrb[0].mxu0 %v1772
  %v1817 = vpop.f32.mrb[0].mxu0
  %v1818 = vadd.f32 %v1757, %v1817
  %v1819 = vpop.f32.mrb[0].mxu0
  %v1820 = vpop.f32.mrb[0].mxu0
  %v1821 = vadd.f32 %v1757, %v1820
  %v1822 = vpop.f32.mrb[0].mxu0
  %1823 = vmatprep.mubr.bf16.mxu0 0
  %1824 = vmatmul.mubr.bf16.gmra.mrb[0].mxu0 %v1775
  %v1825 = vpop.f32.mrb[0].mxu0
  %v1826 = vadd.f32 %v1757, %v1825
  %v1827 = vpop.f32.mrb[0].mxu0
  %v1828 = vpop.f32.mrb[0].mxu0
  %v1829 = vadd.f32 %v1757, %v1828
  %v1830 = vpop.f32.mrb[0].mxu0
  %1831 = vmatprep.mubr.bf16.mxu0 0
  %1832 = vmatmul.mubr.bf16.gmra.mrb[0].mxu0 %v1778
  %v1833 = vpop.f32.mrb[0].mxu0
  %v1834 = vadd.f32 %v1757, %v1833
  %v1835 = vpop.f32.mrb[0].mxu0
  %v1836 = vpop.f32.mrb[0].mxu0
  %v1837 = vadd.f32 %v1757, %v1836
  %v1838 = vpop.f32.mrb[0].mxu0
  %1839 = vmatprep.mubr.bf16.mxu0 0
  %1840 = vmatmul.mubr.bf16.gmra.mrb[0].mxu0 %v1781
  %v1841 = vpop.f32.mrb[0].mxu0
  %v1842 = vadd.f32 %v1757, %v1841
  %v1843 = vpop.f32.mrb[0].mxu0
  %v1844 = vpop.f32.mrb[0].mxu0
  %v1845 = vadd.f32 %v1757, %v1844
  %v1846 = vpop.f32.mrb[0].mxu0
  %1847 = vdwg.mxu0
  %1848 = vst [vmem:[%s9] sm:$0xff] %v1818
  %1849 = vst [vmem:[%s9 + $0x8] sm:$0xff] %v1821
  %1850 = vst [vmem:[%s9 + $0x10] sm:$0xff] %v1826
  %1851 = vst [vmem:[%s9 + $0x18] sm:$0xff] %v1829
  %1852 = vst [vmem:[%s9 + $0x20] sm:$0xff] %v1834
  %1853 = vst [vmem:[%s9 + $0x28] sm:$0xff] %v1837
  %1854 = vst [vmem:[%s9 + $0x30] sm:$0xff] %v1842
  %1855 = vst [vmem:[%s9 + $0x38] sm:$0xff] %v1845
  // Predicated region
  $region38: #{lstm_lm_forward.1} parent=0 // pred_check
    _
  $region39: #{lstm_lm_forward.1} parent=0 // pred_check_branch
    %1857 = sbr.rel (0) target = $region41
  $region40: #{lstm_lm_forward.1} parent=0 // pred_region
    _
  $region41: #{lstm_lm_forward.1} parent=0 // pred_fallthru
    _
  // Predicated region
  $region42: #{lstm_lm_forward.1} parent=0 // pred_check
    _
  $region43: #{lstm_lm_forward.1} parent=0 // pred_check_branch
    %1859 = sbr.rel (0) target = $region45
  $region44: #{lstm_lm_forward.1} parent=0 // pred_region
    _
  $region45: #{lstm_lm_forward.1} parent=0 // pred_fallthru
    _
  // Predicated region
  $region46: #{lstm_lm_forward.1} parent=0 // pred_check
    _
  $region47: #{lstm_lm_forward.1} parent=0 // pred_check_branch
    %1861 = sbr.rel (0) target = $region49
  $region48: #{lstm_lm_forward.1} parent=0 // pred_region
    _
  $region49: #{lstm_lm_forward.1} parent=0 // pred_fallthru
    _
  // Predicated region
  $region50: #{lstm_lm_forward.1} parent=0 // pred_check
    _
  $region51: #{lstm_lm_forward.1} parent=0 // pred_check_branch
    %1863 = sbr.rel (0) target = $region53
  $region52: #{lstm_lm_forward.1} parent=0 // pred_region
    _
  $region53: #{lstm_lm_forward.1} parent=0 // pred_fallthru
    _
  // Predicated region
  $region54: #{lstm_lm_forward.1} parent=0 // pred_check
    _
  $region55: #{lstm_lm_forward.1} parent=0 // pred_check_branch
    %1865 = sbr.rel (0) target = $region57
  $region56: #{lstm_lm_forward.1} parent=0 // pred_region
    _
  $region57: #{lstm_lm_forward.1} parent=0 // pred_fallthru
    _
  // Predicated region
  $region58: #{lstm_lm_forward.1} parent=0 // pred_check
    _
  $region59: #{lstm_lm_forward.1} parent=0 // pred_check_branch
    %1867 = sbr.rel (0) target = $region61
  $region60: #{lstm_lm_forward.1} parent=0 // pred_region
    _
  $region61: #{lstm_lm_forward.1} parent=0 // pred_fallthru
    _

</llo_original>
